<compile_context>
chip_gen: v6e
topology: v6e:2x2x1
jax: 0.10.0
libtpu: 0.0.40
codegen_flags: <defaults>
</compile_context>

<pallas_src>
import math

import jax
import jax.numpy as jnp
from jax.experimental import pallas as pl
from jax.experimental.pallas import tpu as pltpu

# --- SDE config (VPSDE, continuous=True, reduce_mean=True, likelihood_weighting=False,
#     noise_sampling_method='vanilla') ---
BETA_MIN = 0.1
BETA_MAX = 20.0
NUM_SCALES = 1000
SAMPLING_EPS = 1e-3
SDE_T = 1.0

LANES = 128


def sde_loss_kernel(coef_ref, std_ref,              # SMEM: per-batch scalars (B,)
                    xp_ref, xc_ref, z_ref,          # VMEM (1, C, TN) channels-first blocks
                    bias1_ref,                      # VMEM (1, HID, 1): b1 + temb[b]
                    w1at_ref, w1bt_ref,             # VMEM (HID, C) transposed layer-1 weights
                    w2t_ref, b2t_ref,               # VMEM (C, HID), (C, 1)
                    loss_ref):                      # out VMEM (1, 1, 128) accumulator
    bidx = pl.program_id(0)
    nidx = pl.program_id(1)

    @pl.when(nidx == 0)
    def _():
        loss_ref[...] = jnp.zeros_like(loss_ref)

    coef = coef_ref[bidx]        # exp(log_mean_coeff) for this sample
    std = std_ref[bidx]          # sqrt(1 - exp(2*log_mean_coeff))

    xp = xp_ref[0]               # (C, TN)  x_pred
    xc = xc_ref[0]               # (C, TN)  cond frames
    z = z_ref[0]                 # (C, TN)  vanilla noise

    # VPSDE marginal_prob: perturbed = mean + std * z
    perturbed = coef * xp + std * z

    # synthetic score model (channels-first): h = W1a^T @ perturbed + W1b^T @ xc + (b1+temb[b])
    h = (jnp.dot(w1at_ref[...], perturbed, preferred_element_type=jnp.float32)
         + jnp.dot(w1bt_ref[...], xc, preferred_element_type=jnp.float32)
         + bias1_ref[0])                                   # (HID, TN)
    h = jnp.maximum(h, 0.0)
    out = jnp.dot(w2t_ref[...], h, preferred_element_type=jnp.float32) + b2t_ref[...]  # (C, TN)

    # score = -out / std ; resid = score * std + z  ==  z - out   (exact algebraic fold)
    resid = z - out
    sq = resid * resid                                     # (C, TN)

    # Fold the TN lanes into a 128-wide partial (static, 128-aligned slices), then a cheap
    # sublane reduce -> (1, 128).  Avoids a full cross-lane reduction every grid step; the
    # final 128-lane sum happens once in the wrapper.
    tn = sq.shape[-1]
    part = sq[:, 0:LANES]
    for j in range(1, tn // LANES):
        part = part + sq[:, j * LANES:(j + 1) * LANES]
    acc = jnp.sum(part, axis=0, keepdims=True)             # (1, 128)
    loss_ref[...] = loss_ref[...] + acc[None, :, :]


def sdes_forward(x_cond, x_pred, params, t, z, *, tile_n=8192):
    """Computes SDEs.forward (sde_loss_fn) given pre-drawn t ~ U(eps,T) and vanilla noise z."""
    B, C, F, H, W = x_pred.shape
    N = F * H * W
    HID = params["w2"].shape[0]
    tile_n = min(tile_n, N)
    assert N % tile_n == 0 and tile_n % LANES == 0
    n_tiles = N // tile_n

    t = t.astype(jnp.float32)
    # VPSDE.marginal_prob coefficients
    log_mean_coeff = -0.25 * t ** 2 * (BETA_MAX - BETA_MIN) - 0.5 * t * BETA_MIN
    coef = jnp.exp(log_mean_coeff).astype(jnp.float32)                       # (B,)
    std = jnp.sqrt(1.0 - jnp.exp(2.0 * log_mean_coeff)).astype(jnp.float32)  # (B,)

    # time embedding (tiny, per-batch): labels = t * 999 (continuous VPSDE score_fn)
    labels = t * 999.0
    half = HID // 2
    freqs = jnp.exp(-math.log(10000.0) * jnp.arange(half, dtype=jnp.float32) / half)
    ang = labels[:, None] * freqs[None, :]
    emb = jnp.concatenate([jnp.sin(ang), jnp.cos(ang)], axis=-1)             # (B, HID)
    temb = (emb @ params["wt"] + params["bt"]).astype(jnp.float32)           # (B, HID)
    bias1 = (temb + params["b1"]).reshape(B, HID, 1).astype(jnp.float32)     # (B, HID, 1)

    # channels-first rows: NCFHW -> (B, C, N) is a free trailing-dim merge (NO transpose pass)
    xp = x_pred.reshape(B, C, N)
    xc = x_cond.reshape(B, C, N)
    zr = z.reshape(B, C, N)

    # tiny transposed score-model weights so the kernel contracts W @ x (HID/C on sublanes)
    w1at = params["w1a"].T.astype(jnp.float32)     # (HID, C)
    w1bt = params["w1b"].T.astype(jnp.float32)     # (HID, C)
    w2t = params["w2"].T.astype(jnp.float32)       # (C, HID)
    b2t = params["b2"].reshape(1, C).T.astype(jnp.float32)   # (C, 1)

    row_spec = pl.BlockSpec((1, C, tile_n), lambda bi, ni: (bi, 0, ni))

    def full(a):
        return pl.BlockSpec(a.shape, lambda bi, ni: (0,) * a.ndim)

    loss_sums = pl.pallas_call(
        sde_loss_kernel,
        out_shape=jax.ShapeDtypeStruct((B, 1, LANES), jnp.float32),
        grid=(B, n_tiles),
        in_specs=[
            pl.BlockSpec(memory_space=pltpu.MemorySpace.SMEM),   # coef (B,)
            pl.BlockSpec(memory_space=pltpu.MemorySpace.SMEM),   # std  (B,)
            row_spec, row_spec, row_spec,                        # x_pred, x_cond, z blocks
            pl.BlockSpec((1, HID, 1), lambda bi, ni: (bi, 0, 0)),  # per-batch bias (b1+temb)
            full(w1at), full(w1bt), full(w2t), full(b2t),
        ],
        out_specs=pl.BlockSpec((1, 1, LANES), lambda bi, ni: (bi, 0, 0)),
        compiler_params=pltpu.CompilerParams(
            dimension_semantics=("parallel", "arbitrary")),
    )(coef, std, xp, xc, zr, bias1, w1at, w1bt, w2t, b2t)

    # reduce_mean over per-sample elements, then mean over batch
    per_sample = jnp.sum(loss_sums.reshape(B, -1), axis=-1) / float(C * N)
    return jnp.mean(per_sample)


def reference_loss(x_cond, x_pred, params, t, z):
    """Plain-JAX reference of the same forward semantics (keeps the -score/std round-trip)."""
    B, C, F, H, W = x_pred.shape
    HID = params["w2"].shape[0]
    log_mean_coeff = -0.25 * t ** 2 * (BETA_MAX - BETA_MIN) - 0.5 * t * BETA_MIN
    coef = jnp.exp(log_mean_coeff)
    std = jnp.sqrt(1.0 - jnp.exp(2.0 * log_mean_coeff))
    labels = t * 999.0
    half = HID // 2
    freqs = jnp.exp(-math.log(10000.0) * jnp.arange(half, dtype=jnp.float32) / half)
    ang = labels[:, None] * freqs[None, :]
    emb = jnp.concatenate([jnp.sin(ang), jnp.cos(ang)], axis=-1)
    temb = emb @ params["wt"] + params["bt"]
    N = F * H * W
    rows = lambda a: a.reshape(B, C, N).transpose(0, 2, 1)
    xp, xc, zr = rows(x_pred), rows(x_cond), rows(z)
    perturbed = coef[:, None, None] * xp + std[:, None, None] * zr
    h = perturbed @ params["w1a"] + xc @ params["w1b"] + params["b1"] + temb[:, None, :]
    h = jnp.maximum(h, 0.0)
    out = h @ params["w2"] + params["b2"]
    score = -out / std[:, None, None]
    resid = score * std[:, None, None] + zr
    losses = jnp.mean((resid ** 2).reshape(B, -1), axis=-1)
    return jnp.mean(losses)


if __name__ == "__main__":
    key = jax.random.PRNGKey(0)
    B, C, F, H, W = 2, 4, 8, 16, 16
    HID = 32
    ks = jax.random.split(key, 8)

    x_cond = jax.random.normal(ks[0], (B, C, F, H, W), jnp.float32)
    x_pred = jax.random.normal(ks[1], (B, C, F, H, W), jnp.float32)

    # randomness of sde_loss_fn drawn in glue (deterministic seed):
    # t ~ U(sampling_eps, T), z = vanilla noise_sampling
    t = jax.random.uniform(ks[2], (B,), jnp.float32) * (SDE_T - SAMPLING_EPS) + SAMPLING_EPS
    z = jax.random.normal(ks[3], (B, C, F, H, W), jnp.float32)

    # TODO(synk): `score_model` is an external module passed into SDEs.__init__; its weights are
    # synthesized here as a small per-voxel MLP with sinusoidal time embedding.
    params = {
        "w1a": jax.random.normal(ks[4], (C, HID), jnp.float32) / math.sqrt(2 * C),
        "w1b": jax.random.normal(ks[5], (C, HID), jnp.float32) / math.sqrt(2 * C),
        "b1": jnp.zeros((1, HID), jnp.float32),
        "w2": jax.random.normal(ks[6], (HID, C), jnp.float32) / math.sqrt(HID),
        "b2": jnp.zeros((1, C), jnp.float32),
        "wt": jax.random.normal(ks[7], (HID, HID), jnp.float32) / math.sqrt(HID),
        "bt": jnp.zeros((HID,), jnp.float32),
    }

    loss = sdes_forward(x_cond, x_pred, params, t, z)
    loss = jax.block_until_ready(loss)
    ref = reference_loss(x_cond, x_pred, params, t, z)

    assert bool(jnp.isfinite(loss))
    assert abs(float(loss) - float(ref)) <= 2e-3 * max(1.0, abs(float(ref))), (loss, ref)
    print("KERNEL_OK")
</pallas_src>

<mosaic_0001>
module attributes {stable_mosaic.version = 11 : i64} {
  func.func @sde_loss_kernel(%arg0: i32, %arg1: i32, %arg2: memref<2xf32, #tpu.memory_space<smem>>, %arg3: memref<2xf32, #tpu.memory_space<smem>>, %arg4: memref<1x4x2048xf32, #tpu.memory_space<vmem>>, %arg5: memref<1x4x2048xf32, #tpu.memory_space<vmem>>, %arg6: memref<1x4x2048xf32, #tpu.memory_space<vmem>>, %arg7: memref<1x32x1xf32, #tpu.memory_space<vmem>>, %arg8: memref<32x4xf32, #tpu.memory_space<vmem>>, %arg9: memref<32x4xf32, #tpu.memory_space<vmem>>, %arg10: memref<4x32xf32, #tpu.memory_space<vmem>>, %arg11: memref<4x1xf32, #tpu.memory_space<vmem>>, %arg12: memref<1x1x128xf32, #tpu.memory_space<vmem>>) attributes {dimension_semantics = [#tpu.dimension_semantics<parallel>, #tpu.dimension_semantics<arbitrary>], iteration_bounds = array<i64: 2, 1>, scalar_prefetch = 0 : i64, scratch_operands = 0 : i64, tpu.core_type = #tpu.core_type<tc>, window_params = [{transform_indices = @transform_0, window_bounds = array<i64: 2>}, {transform_indices = @transform_1, window_bounds = array<i64: 2>}, {transform_indices = @transform_2, window_bounds = array<i64: 1, 4, 2048>}, {transform_indices = @transform_3, window_bounds = array<i64: 1, 4, 2048>}, {transform_indices = @transform_4, window_bounds = array<i64: 1, 4, 2048>}, {transform_indices = @transform_5, window_bounds = array<i64: 1, 32, 1>}, {pipeline_mode = #tpu.pipeline_mode<synchronous>, transform_indices = @transform_6, window_bounds = array<i64: 32, 4>}, {pipeline_mode = #tpu.pipeline_mode<synchronous>, transform_indices = @transform_7, window_bounds = array<i64: 32, 4>}, {pipeline_mode = #tpu.pipeline_mode<synchronous>, transform_indices = @transform_8, window_bounds = array<i64: 4, 32>}, {pipeline_mode = #tpu.pipeline_mode<synchronous>, transform_indices = @transform_9, window_bounds = array<i64: 4, 1>}, {transform_indices = @transform_10, window_bounds = array<i64: 1, 1, 128>}]} {
    %c0_i32 = arith.constant 0 : i32
    %0 = arith.cmpi eq, %arg1, %c0_i32 : i32
    %1 = arith.extui %0 : i1 to i32
    %c0_i32_0 = arith.constant 0 : i32
    %2 = arith.cmpi ne, %1, %c0_i32_0 : i32
    scf.if %2 {
      %cst_30 = arith.constant 0.000000e+00 : f32
      %73 = vector.broadcast %cst_30 : f32 to vector<1x1x128xf32>
      %c0_31 = arith.constant 0 : index
      %c0_32 = arith.constant 0 : index
      %c0_33 = arith.constant 0 : index
      %74 = vector.load %arg12[%c0_31, %c0_32, %c0_33] : memref<1x1x128xf32, #tpu.memory_space<vmem>>, vector<1x1x128xf32>
      tpu.vector_store %arg12[%c0_31, %c0_32, %c0_33], %73 {strides = array<i32>} : memref<1x1x128xf32, #tpu.memory_space<vmem>>, vector<1x1x128xf32>,
    } else {
    }
    %3 = arith.index_cast %arg0 : i32 to index
    %4 = memref.load %arg2[%3] : memref<2xf32, #tpu.memory_space<smem>>
    %5 = arith.index_cast %arg0 : i32 to index
    %6 = memref.load %arg3[%5] : memref<2xf32, #tpu.memory_space<smem>>
    %c0 = arith.constant 0 : index
    %c0_1 = arith.constant 0 : index
    %c0_2 = arith.constant 0 : index
    %7 = vector.load %arg4[%c0, %c0_1, %c0_2] : memref<1x4x2048xf32, #tpu.memory_space<vmem>>, vector<1x4x2048xf32>
    %8 = vector.shape_cast %7 : vector<1x4x2048xf32> to vector<4x2048xf32>
    %c0_3 = arith.constant 0 : index
    %c0_4 = arith.constant 0 : index
    %c0_5 = arith.constant 0 : index
    %9 = vector.load %arg5[%c0_3, %c0_4, %c0_5] : memref<1x4x2048xf32, #tpu.memory_space<vmem>>, vector<1x4x2048xf32>
    %10 = vector.shape_cast %9 : vector<1x4x2048xf32> to vector<4x2048xf32>
    %c0_6 = arith.constant 0 : index
    %c0_7 = arith.constant 0 : index
    %c0_8 = arith.constant 0 : index
    %11 = vector.load %arg6[%c0_6, %c0_7, %c0_8] : memref<1x4x2048xf32, #tpu.memory_space<vmem>>, vector<1x4x2048xf32>
    %12 = vector.shape_cast %11 : vector<1x4x2048xf32> to vector<4x2048xf32>
    %13 = vector.broadcast %4 : f32 to vector<4x2048xf32>
    %14 = arith.mulf %13, %8 : vector<4x2048xf32>
    %15 = vector.broadcast %6 : f32 to vector<4x2048xf32>
    %16 = arith.mulf %15, %12 : vector<4x2048xf32>
    %17 = arith.addf %14, %16 : vector<4x2048xf32>
    %c0_9 = arith.constant 0 : index
    %c0_10 = arith.constant 0 : index
    %18 = vector.load %arg8[%c0_9, %c0_10] : memref<32x4xf32, #tpu.memory_space<vmem>>, vector<32x4xf32>
    %cst = arith.constant dense<0.000000e+00> : vector<32x2048xf32>
    %19 = tpu.matmul %18, %17, %cst {dimension_numbers = #tpu.dot_dimension_numbers<[1], [0], [0], [1], [0, 0, 1, 1], [], []>} : vector<32x4xf32>, vector<4x2048xf32>, vector<32x2048xf32> -> vector<32x2048xf32>
    %c0_11 = arith.constant 0 : index
    %c0_12 = arith.constant 0 : index
    %20 = vector.load %arg9[%c0_11, %c0_12] : memref<32x4xf32, #tpu.memory_space<vmem>>, vector<32x4xf32>
    %cst_13 = arith.constant dense<0.000000e+00> : vector<32x2048xf32>
    %21 = tpu.matmul %20, %10, %cst_13 {dimension_numbers = #tpu.dot_dimension_numbers<[1], [0], [0], [1], [0, 0, 1, 1], [], []>} : vector<32x4xf32>, vector<4x2048xf32>, vector<32x2048xf32> -> vector<32x2048xf32>
    %22 = arith.addf %19, %21 : vector<32x2048xf32>
    %c0_14 = arith.constant 0 : index
    %c0_15 = arith.constant 0 : index
    %c0_16 = arith.constant 0 : index
    %23 = vector.load %arg7[%c0_14, %c0_15, %c0_16] : memref<1x32x1xf32, #tpu.memory_space<vmem>>, vector<1x32x1xf32>
    %24 = vector.shape_cast %23 : vector<1x32x1xf32> to vector<32x1xf32>
    %25 = vector.broadcast %24 : vector<32x1xf32> to vector<32x2048xf32>
    %26 = arith.addf %22, %25 : vector<32x2048xf32>
    %cst_17 = arith.constant 0.000000e+00 : f32
    %27 = vector.broadcast %cst_17 : f32 to vector<32x2048xf32>
    %28 = arith.maximumf %26, %27 : vector<32x2048xf32>
    %c0_18 = arith.constant 0 : index
    %c0_19 = arith.constant 0 : index
    %29 = vector.load %arg10[%c0_18, %c0_19] : memref<4x32xf32, #tpu.memory_space<vmem>>, vector<4x32xf32>
    %cst_20 = arith.constant dense<0.000000e+00> : vector<4x2048xf32>
    %30 = tpu.matmul %29, %28, %cst_20 {dimension_numbers = #tpu.dot_dimension_numbers<[1], [0], [0], [1], [0, 0, 1, 1], [], []>} : vector<4x32xf32>, vector<32x2048xf32>, vector<4x2048xf32> -> vector<4x2048xf32>
    %c0_21 = arith.constant 0 : index
    %c0_22 = arith.constant 0 : index
    %31 = vector.load %arg11[%c0_21, %c0_22] : memref<4x1xf32, #tpu.memory_space<vmem>>, vector<4x1xf32>
    %32 = vector.broadcast %31 : vector<4x1xf32> to vector<4x2048xf32>
    %33 = arith.addf %30, %32 : vector<4x2048xf32>
    %34 = arith.subf %12, %33 : vector<4x2048xf32>
    %35 = arith.mulf %34, %34 : vector<4x2048xf32>
    %36 = vector.extract_strided_slice %35 {offsets = [0, 0], sizes = [4, 128], strides = [1, 1]} : vector<4x2048xf32> to vector<4x128xf32>
    %37 = vector.extract_strided_slice %35 {offsets = [0, 128], sizes = [4, 128], strides = [1, 1]} : vector<4x2048xf32> to vector<4x128xf32>
    %38 = arith.addf %36, %37 : vector<4x128xf32>
    %39 = vector.extract_strided_slice %35 {offsets = [0, 256], sizes = [4, 128], strides = [1, 1]} : vector<4x2048xf32> to vector<4x128xf32>
    %40 = arith.addf %38, %39 : vector<4x128xf32>
    %41 = vector.extract_strided_slice %35 {offsets = [0, 384], sizes = [4, 128], strides = [1, 1]} : vector<4x2048xf32> to vector<4x128xf32>
    %42 = arith.addf %40, %41 : vector<4x128xf32>
    %43 = vector.extract_strided_slice %35 {offsets = [0, 512], sizes = [4, 128], strides = [1, 1]} : vector<4x2048xf32> to vector<4x128xf32>
    %44 = arith.addf %42, %43 : vector<4x128xf32>
    %45 = vector.extract_strided_slice %35 {offsets = [0, 640], sizes = [4, 128], strides = [1, 1]} : vector<4x2048xf32> to vector<4x128xf32>
    %46 = arith.addf %44, %45 : vector<4x128xf32>
    %47 = vector.extract_strided_slice %35 {offsets = [0, 768], sizes = [4, 128], strides = [1, 1]} : vector<4x2048xf32> to vector<4x128xf32>
    %48 = arith.addf %46, %47 : vector<4x128xf32>
    %49 = vector.extract_strided_slice %35 {offsets = [0, 896], sizes = [4, 128], strides = [1, 1]} : vector<4x2048xf32> to vector<4x128xf32>
    %50 = arith.addf %48, %49 : vector<4x128xf32>
    %51 = vector.extract_strided_slice %35 {offsets = [0, 1024], sizes = [4, 128], strides = [1, 1]} : vector<4x2048xf32> to vector<4x128xf32>
    %52 = arith.addf %50, %51 : vector<4x128xf32>
    %53 = vector.extract_strided_slice %35 {offsets = [0, 1152], sizes = [4, 128], strides = [1, 1]} : vector<4x2048xf32> to vector<4x128xf32>
    %54 = arith.addf %52, %53 : vector<4x128xf32>
    %55 = vector.extract_strided_slice %35 {offsets = [0, 1280], sizes = [4, 128], strides = [1, 1]} : vector<4x2048xf32> to vector<4x128xf32>
    %56 = arith.addf %54, %55 : vector<4x128xf32>
    %57 = vector.extract_strided_slice %35 {offsets = [0, 1408], sizes = [4, 128], strides = [1, 1]} : vector<4x2048xf32> to vector<4x128xf32>
    %58 = arith.addf %56, %57 : vector<4x128xf32>
    %59 = vector.extract_strided_slice %35 {offsets = [0, 1536], sizes = [4, 128], strides = [1, 1]} : vector<4x2048xf32> to vector<4x128xf32>
    %60 = arith.addf %58, %59 : vector<4x128xf32>
    %61 = vector.extract_strided_slice %35 {offsets = [0, 1664], sizes = [4, 128], strides = [1, 1]} : vector<4x2048xf32> to vector<4x128xf32>
    %62 = arith.addf %60, %61 : vector<4x128xf32>
    %63 = vector.extract_strided_slice %35 {offsets = [0, 1792], sizes = [4, 128], strides = [1, 1]} : vector<4x2048xf32> to vector<4x128xf32>
    %64 = arith.addf %62, %63 : vector<4x128xf32>
    %65 = vector.extract_strided_slice %35 {offsets = [0, 1920], sizes = [4, 128], strides = [1, 1]} : vector<4x2048xf32> to vector<4x128xf32>
    %66 = arith.addf %64, %65 : vector<4x128xf32>
    %cst_23 = arith.constant dense<0.000000e+00> : vector<128xf32>
    %67 = vector.multi_reduction <add>, %66, %cst_23 [0] : vector<4x128xf32> to vector<128xf32>
    %68 = vector.shape_cast %67 : vector<128xf32> to vector<1x128xf32>
    %c0_24 = arith.constant 0 : index
    %c0_25 = arith.constant 0 : index
    %c0_26 = arith.constant 0 : index
    %69 = vector.load %arg12[%c0_24, %c0_25, %c0_26] : memref<1x1x128xf32, #tpu.memory_space<vmem>>, vector<1x1x128xf32>
    %70 = vector.shape_cast %68 : vector<1x128xf32> to vector<1x1x128xf32>
    %71 = arith.addf %69, %70 : vector<1x1x128xf32>
    %c0_27 = arith.constant 0 : index
    %c0_28 = arith.constant 0 : index
    %c0_29 = arith.constant 0 : index
    %72 = vector.load %arg12[%c0_27, %c0_28, %c0_29] : memref<1x1x128xf32, #tpu.memory_space<vmem>>, vector<1x1x128xf32>
    tpu.vector_store %arg12[%c0_27, %c0_28, %c0_29], %71 {strides = array<i32>} : memref<1x1x128xf32, #tpu.memory_space<vmem>>, vector<1x1x128xf32>,
    return
  }
  func.func @transform_0(%arg0: i32, %arg1: i32) -> i32 {
    %c0_i32 = arith.constant 0 : i32
    %c0_i32_0 = arith.constant 0 : i32
    return %c0_i32 : i32
  }
  func.func @transform_1(%arg0: i32, %arg1: i32) -> i32 {
    %c0_i32 = arith.constant 0 : i32
    %c0_i32_0 = arith.constant 0 : i32
    return %c0_i32 : i32
  }
  func.func @transform_2(%arg0: i32, %arg1: i32) -> (i32, i32, i32) {
    %c0_i32 = arith.constant 0 : i32
    %c0_i32_0 = arith.constant 0 : i32
    return %arg0, %c0_i32, %arg1 : i32, i32, i32
  }
  func.func @transform_3(%arg0: i32, %arg1: i32) -> (i32, i32, i32) {
    %c0_i32 = arith.constant 0 : i32
    %c0_i32_0 = arith.constant 0 : i32
    return %arg0, %c0_i32, %arg1 : i32, i32, i32
  }
  func.func @transform_4(%arg0: i32, %arg1: i32) -> (i32, i32, i32) {
    %c0_i32 = arith.constant 0 : i32
    %c0_i32_0 = arith.constant 0 : i32
    return %arg0, %c0_i32, %arg1 : i32, i32, i32
  }
  func.func @transform_5(%arg0: i32, %arg1: i32) -> (i32, i32, i32) {
    %c0_i32 = arith.constant 0 : i32
    %c0_i32_0 = arith.constant 0 : i32
    %c0_i32_1 = arith.constant 0 : i32
    return %arg0, %c0_i32, %c0_i32_0 : i32, i32, i32
  }
  func.func @transform_6(%arg0: i32, %arg1: i32) -> (i32, i32) {
    %c0_i32 = arith.constant 0 : i32
    %c0_i32_0 = arith.constant 0 : i32
    %c0_i32_1 = arith.constant 0 : i32
    return %c0_i32, %c0_i32_0 : i32, i32
  }
  func.func @transform_7(%arg0: i32, %arg1: i32) -> (i32, i32) {
    %c0_i32 = arith.constant 0 : i32
    %c0_i32_0 = arith.constant 0 : i32
    %c0_i32_1 = arith.constant 0 : i32
    return %c0_i32, %c0_i32_0 : i32, i32
  }
  func.func @transform_8(%arg0: i32, %arg1: i32) -> (i32, i32) {
    %c0_i32 = arith.constant 0 : i32
    %c0_i32_0 = arith.constant 0 : i32
    %c0_i32_1 = arith.constant 0 : i32
    return %c0_i32, %c0_i32_0 : i32, i32
  }
  func.func @transform_9(%arg0: i32, %arg1: i32) -> (i32, i32) {
    %c0_i32 = arith.constant 0 : i32
    %c0_i32_0 = arith.constant 0 : i32
    %c0_i32_1 = arith.constant 0 : i32
    return %c0_i32, %c0_i32_0 : i32, i32
  }
  func.func @transform_10(%arg0: i32, %arg1: i32) -> (i32, i32, i32) {
    %c0_i32 = arith.constant 0 : i32
    %c0_i32_0 = arith.constant 0 : i32
    %c0_i32_1 = arith.constant 0 : i32
    return %arg0, %c0_i32, %c0_i32_0 : i32, i32, i32
  }
}

</mosaic_0001>

<llo_original>
// kernel: tpu_custom_call.1
$region0: #{tpu_custom_call.1}
  #allocation0 [shape = 'u32[]', space=smem, size = 0x4, offset = 0x4, fixed_abs, tag = 'smem constant byte address 0x4 - core index']
  #allocation1 [shape = 'u32[144,128]{1,0:T(1,128)}', space=vmem, size = 0x12000, scoped, tag = 'internal scratch']
  %s0 = inlined_call_operand.vmem [shape: f32[2], index: 0, kind: input, shape index: {}]
  %s1 = inlined_call_operand.vmem [shape: f32[2], index: 1, kind: input, shape index: {}]
  %s2 = inlined_call_operand.vmem [shape: f32[2,4,2048], index: 2, kind: input, shape index: {}]
  %s3 = inlined_call_operand.hbm [shape: f32[2,4,2048], index: 3, kind: input, shape index: {}]
  %s4 = inlined_call_operand.hbm [shape: f32[2,4,2048], index: 4, kind: input, shape index: {}]
  %s5 = inlined_call_operand.vmem [shape: f32[2,32,1], index: 5, kind: input, shape index: {}]
  %s6 = inlined_call_operand.vmem [shape: f32[32,4], index: 6, kind: input, shape index: {}]
  %s7 = inlined_call_operand.vmem [shape: f32[32,4], index: 7, kind: input, shape index: {}]
  %s8 = inlined_call_operand.vmem [shape: f32[4,32], index: 8, kind: input, shape index: {}]
  %s9 = inlined_call_operand.vmem [shape: f32[4,1], index: 9, kind: input, shape index: {}]
  %s10 = inlined_call_operand.hbm [shape: f32[2,1,128], index: 10, kind: output, shape index: {}]
  %s11 = sld [smem:[#allocation0]]
  $region93: #{tpu_custom_call.1} parent=0
    _
  %s13 = ssub.s32 1, %s11
  %s14 = scalar_select 0, %s13, %s11
  $region1: #{tpu_custom_call.1} parent=0
    #allocation2 [shape = 'u8[512]{0}', space=smem, size = 0x200, scoped, tag = 'input window, operand 0, single buffered']
    #allocation3 [shape = 's32[2]{0}', space=sflag, size = 0x8, scoped, tag = 'scoped memory for tpu_custom_call.1']
    #allocation4 [shape = 's32[2]{0}', space=sflag, size = 0x8, scoped, tag = 'scoped memory for tpu_custom_call.1']
    #allocation5 [shape = 's32[2]{0}', space=sflag, size = 0x8, scoped, tag = 'scoped memory for tpu_custom_call.1']
    #allocation6 [shape = 'u8[512]{0}', space=smem, size = 0x200, scoped, tag = 'input window, operand 1, single buffered']
    #allocation7 [shape = 's32[1]{0}', space=sflag, size = 0x4, scoped, tag = 'scoped memory for tpu_custom_call.1']
    #allocation8 [shape = 'u8[65536]{0}', space=vmem, size = 0x10000, scoped, tag = 'input window, operand 3']
    #allocation9 [shape = 'u8[65536]{0}', space=vmem, size = 0x10000, scoped, tag = 'input window, operand 4']
    #allocation10 [shape = 's32[2]{0}', space=sflag, size = 0x8, scoped, tag = 'scoped memory for tpu_custom_call.1']
    #allocation11 [shape = 'u8[1024]{0}', space=vmem, size = 0x400, scoped, tag = 'output window, operand 0']
    %15 = vsyncpa [#allocation5], 0
    %16 = vsyncpa [#allocation7], 0
    %17 = vsyncpa [#allocation3], 0
    %s18 = scalar_lea.sflag [#allocation3], 1
    %19 = vsyncpa %s18, 0
    %20 = vsyncpa [#allocation10], 0
    %s21 = scalar_lea.sflag [#allocation10], 1
    %22 = vsyncpa %s21, 0
    %23 = vsyncpa [#allocation4], 0
    %s24 = scalar_lea.sflag [#allocation4], 1
    %25 = vsyncpa %s24, 0
    loop: start=0, step=1, limit=4
    $region2: #{tpu_custom_call.1} parent=1 // loop_pre_header
      _
    $region3: #{tpu_custom_call.1} parent=1 // loop_header
      %s27 = sphi 0, %s31
      %p28 = scmp.ge.s32.totalorder %s27, 4
      %s34 = sphi 0, %s46
      %s35 = sphi 0, %s42
      %s36 = sphi 0, %s34
      %s37 = sphi 0, %s35
      %s38 = sphi 0, %s36
      %s39 = sphi 0, %s37
      %s47 = sphi 0, %s47
      %s49 = sphi 0, %s47
      %s50 = sphi 0, %s49
      %s64 = sphi 0, %s50
      %s68 = sphi 0, %s68
      %s70 = sphi 0, %s68
      %s71 = sphi 0, %s70
      %s85 = sphi 0, %s71
      %s93 = sphi 0, %s95
      %s96 = sphi 0, %s93
      %s97 = sphi 0, %s96
      %s113 = sphi 0, %s97
      %s121 = sphi 0, %s123
      %s124 = sphi 0, %s121
      %s125 = sphi 0, %s124
      %s141 = sphi 0, %s125
      %s149 = sphi 0, %s151
      %s152 = sphi 0, %s149
      %s153 = sphi 0, %s152
      %s169 = sphi 0, %s153
      %s175 = sphi 0, %s177
      %s178 = sphi 0, %s175
      %s179 = sphi 0, %s178
      %s195 = sphi 0, %s179
      %s199 = sphi 0, %s199
      %s201 = sphi 0, %s199
      %s202 = sphi 0, %s201
      %s216 = sphi 0, %s202
      %s220 = sphi 0, %s220
      %s222 = sphi 0, %s220
      %s223 = sphi 0, %s222
      %s237 = sphi 0, %s223
      %s241 = sphi 0, %s241
      %s243 = sphi 0, %s241
      %s244 = sphi 0, %s243
      %s258 = sphi 0, %s244
      %s262 = sphi 0, %s262
      %s264 = sphi 0, %s262
      %s265 = sphi 0, %s264
      %s279 = sphi 0, %s265
      %s285 = sphi 0, %s287
      %s288 = sphi 0, %s285
      %s289 = sphi 0, %s288
      %s305 = sphi 0, %s289
    $region4: #{tpu_custom_call.1} parent=1 // loop_header_branch
      %30 = sbr.rel (%p28) target = $region8
    $region5: #{tpu_custom_call.1} parent=1 // loop_body
      %s32 = ssub.s32 %s27, 1
      %s33 = ssub.s32 %s27, 2
      %s40 = sadd.s32 1, %s35
      %p41 = scmp.ge.s32.totalorder %s40, 1
      %s42 = scalar_select %p41, 0, %s40
      %s43 = sadd.s32 1, %s34
      %s44 = scalar_select %p41, %s43, %s34
      %p45 = scmp.ge.s32.totalorder %s44, 2
      %s46 = scalar_select %p45, 0, %s44
      %s48 = sadd.s32 %s47, 1
      %p51 = scmp.eq.s32.totalorder %s27, 1
      %p52 = scmp.ne.s32.totalorder %s47, %s49
      %p53 = scmp.eq.s32.totalorder %s27, 0
      %p54 = por %p52, %p53
      %p55 = scmp.ne.s32.totalorder %s47, %s49
      %p56 = scmp.eq.s32.totalorder %s32, 1
      %p57 = por %p55, %p56
      %p58 = scmp.ne.s32.totalorder %s49, %s50
      %p59 = scmp.eq.s32.totalorder %s32, 0
      %p60 = por %p58, %p59
      %p61 = scmp.ne.s32.totalorder %s49, %s50
      %p62 = scmp.eq.s32.totalorder %s33, 1
      %p63 = por %p61, %p62
      %p65 = scmp.ne.s32.totalorder %s50, %s64
      %p66 = scmp.eq.s32.totalorder %s33, 0
      %p67 = por %p65, %p66
      %s69 = sadd.s32 %s68, 1
      %p72 = scmp.eq.s32.totalorder %s27, 1
      %p73 = scmp.ne.s32.totalorder %s68, %s70
      %p74 = scmp.eq.s32.totalorder %s27, 0
      %p75 = por %p73, %p74
      %p76 = scmp.ne.s32.totalorder %s68, %s70
      %p77 = scmp.eq.s32.totalorder %s32, 1
      %p78 = por %p76, %p77
      %p79 = scmp.ne.s32.totalorder %s70, %s71
      %p80 = scmp.eq.s32.totalorder %s32, 0
      %p81 = por %p79, %p80
      %p82 = scmp.ne.s32.totalorder %s70, %s71
      %p83 = scmp.eq.s32.totalorder %s33, 1
      %p84 = por %p82, %p83
      %p86 = scmp.ne.s32.totalorder %s71, %s85
      %p87 = scmp.eq.s32.totalorder %s33, 0
      %p88 = por %p86, %p87
      %s89 = ssub.s32 %s34, %s46
      %s90 = ssub.s32 %s35, %s42
      %s91 = sor.u32 %s89, %s90
      %p92 = scmp.eq.s32.totalorder %s91, 0
      %s94 = sadd.s32 %s93, 1
      %s95 = scalar_select %p92, %s93, %s94
      %p98 = pneg %p92
      %p99 = scmp.eq.s32.totalorder %s27, 1
      %p100 = por %p98, %p99
      %p101 = scmp.ne.s32.totalorder %s93, %s96
      %p102 = scmp.eq.s32.totalorder %s27, 0
      %p103 = por %p101, %p102
      %p104 = scmp.ne.s32.totalorder %s93, %s96
      %p105 = scmp.eq.s32.totalorder %s32, 1
      %p106 = por %p104, %p105
      %p107 = scmp.ne.s32.totalorder %s96, %s97
      %p108 = scmp.eq.s32.totalorder %s32, 0
      %p109 = por %p107, %p108
      %p110 = scmp.ne.s32.totalorder %s96, %s97
      %p111 = scmp.eq.s32.totalorder %s33, 1
      %p112 = por %p110, %p111
      %p114 = scmp.ne.s32.totalorder %s97, %s113
      %p115 = scmp.eq.s32.totalorder %s33, 0
      %p116 = por %p114, %p115
      %s117 = ssub.s32 %s34, %s46
      %s118 = ssub.s32 %s35, %s42
      %s119 = sor.u32 %s117, %s118
      %p120 = scmp.eq.s32.totalorder %s119, 0
      %s122 = sadd.s32 %s121, 1
      %s123 = scalar_select %p120, %s121, %s122
      %p126 = pneg %p120
      %p127 = scmp.eq.s32.totalorder %s27, 1
      %p128 = por %p126, %p127
      %p129 = scmp.ne.s32.totalorder %s121, %s124
      %p130 = scmp.eq.s32.totalorder %s27, 0
      %p131 = por %p129, %p130
      %p132 = scmp.ne.s32.totalorder %s121, %s124
      %p133 = scmp.eq.s32.totalorder %s32, 1
      %p134 = por %p132, %p133
      %p135 = scmp.ne.s32.totalorder %s124, %s125
      %p136 = scmp.eq.s32.totalorder %s32, 0
      %p137 = por %p135, %p136
      %p138 = scmp.ne.s32.totalorder %s124, %s125
      %p139 = scmp.eq.s32.totalorder %s33, 1
      %p140 = por %p138, %p139
      %p142 = scmp.ne.s32.totalorder %s125, %s141
      %p143 = scmp.eq.s32.totalorder %s33, 0
      %p144 = por %p142, %p143
      %s145 = ssub.s32 %s34, %s46
      %s146 = ssub.s32 %s35, %s42
      %s147 = sor.u32 %s145, %s146
      %p148 = scmp.eq.s32.totalorder %s147, 0
      %s150 = sadd.s32 %s149, 1
      %s151 = scalar_select %p148, %s149, %s150
      %p154 = pneg %p148
      %p155 = scmp.eq.s32.totalorder %s27, 1
      %p156 = por %p154, %p155
      %p157 = scmp.ne.s32.totalorder %s149, %s152
      %p158 = scmp.eq.s32.totalorder %s27, 0
      %p159 = por %p157, %p158
      %p160 = scmp.ne.s32.totalorder %s149, %s152
      %p161 = scmp.eq.s32.totalorder %s32, 1
      %p162 = por %p160, %p161
      %p163 = scmp.ne.s32.totalorder %s152, %s153
      %p164 = scmp.eq.s32.totalorder %s32, 0
      %p165 = por %p163, %p164
      %p166 = scmp.ne.s32.totalorder %s152, %s153
      %p167 = scmp.eq.s32.totalorder %s33, 1
      %p168 = por %p166, %p167
      %p170 = scmp.ne.s32.totalorder %s153, %s169
      %p171 = scmp.eq.s32.totalorder %s33, 0
      %p172 = por %p170, %p171
      %s173 = ssub.s32 %s34, %s46
      %p174 = scmp.eq.s32.totalorder %s173, 0
      %s176 = sadd.s32 %s175, 1
      %s177 = scalar_select %p174, %s175, %s176
      %p180 = pneg %p174
      %p181 = scmp.eq.s32.totalorder %s27, 1
      %p182 = por %p180, %p181
      %p183 = scmp.ne.s32.totalorder %s175, %s178
      %p184 = scmp.eq.s32.totalorder %s27, 0
      %p185 = por %p183, %p184
      %p186 = scmp.ne.s32.totalorder %s175, %s178
      %p187 = scmp.eq.s32.totalorder %s32, 1
      %p188 = por %p186, %p187
      %p189 = scmp.ne.s32.totalorder %s178, %s179
      %p190 = scmp.eq.s32.totalorder %s32, 0
      %p191 = por %p189, %p190
      %p192 = scmp.ne.s32.totalorder %s178, %s179
      %p193 = scmp.eq.s32.totalorder %s33, 1
      %p194 = por %p192, %p193
      %p196 = scmp.ne.s32.totalorder %s179, %s195
      %p197 = scmp.eq.s32.totalorder %s33, 0
      %p198 = por %p196, %p197
      %s200 = sadd.s32 %s199, 1
      %p203 = scmp.eq.s32.totalorder %s27, 1
      %p204 = scmp.ne.s32.totalorder %s199, %s201
      %p205 = scmp.eq.s32.totalorder %s27, 0
      %p206 = por %p204, %p205
      %p207 = scmp.ne.s32.totalorder %s199, %s201
      %p208 = scmp.eq.s32.totalorder %s32, 1
      %p209 = por %p207, %p208
      %p210 = scmp.ne.s32.totalorder %s201, %s202
      %p211 = scmp.eq.s32.totalorder %s32, 0
      %p212 = por %p210, %p211
      %p213 = scmp.ne.s32.totalorder %s201, %s202
      %p214 = scmp.eq.s32.totalorder %s33, 1
      %p215 = por %p213, %p214
      %p217 = scmp.ne.s32.totalorder %s202, %s216
      %p218 = scmp.eq.s32.totalorder %s33, 0
      %p219 = por %p217, %p218
      %s221 = sadd.s32 %s220, 1
      %p224 = scmp.eq.s32.totalorder %s27, 1
      %p225 = scmp.ne.s32.totalorder %s220, %s222
      %p226 = scmp.eq.s32.totalorder %s27, 0
      %p227 = por %p225, %p226
      %p228 = scmp.ne.s32.totalorder %s220, %s222
      %p229 = scmp.eq.s32.totalorder %s32, 1
      %p230 = por %p228, %p229
      %p231 = scmp.ne.s32.totalorder %s222, %s223
      %p232 = scmp.eq.s32.totalorder %s32, 0
      %p233 = por %p231, %p232
      %p234 = scmp.ne.s32.totalorder %s222, %s223
      %p235 = scmp.eq.s32.totalorder %s33, 1
      %p236 = por %p234, %p235
      %p238 = scmp.ne.s32.totalorder %s223, %s237
      %p239 = scmp.eq.s32.totalorder %s33, 0
      %p240 = por %p238, %p239
      %s242 = sadd.s32 %s241, 1
      %p245 = scmp.eq.s32.totalorder %s27, 1
      %p246 = scmp.ne.s32.totalorder %s241, %s243
      %p247 = scmp.eq.s32.totalorder %s27, 0
      %p248 = por %p246, %p247
      %p249 = scmp.ne.s32.totalorder %s241, %s243
      %p250 = scmp.eq.s32.totalorder %s32, 1
      %p251 = por %p249, %p250
      %p252 = scmp.ne.s32.totalorder %s243, %s244
      %p253 = scmp.eq.s32.totalorder %s32, 0
      %p254 = por %p252, %p253
      %p255 = scmp.ne.s32.totalorder %s243, %s244
      %p256 = scmp.eq.s32.totalorder %s33, 1
      %p257 = por %p255, %p256
      %p259 = scmp.ne.s32.totalorder %s244, %s258
      %p260 = scmp.eq.s32.totalorder %s33, 0
      %p261 = por %p259, %p260
      %s263 = sadd.s32 %s262, 1
      %p266 = scmp.eq.s32.totalorder %s27, 1
      %p267 = scmp.ne.s32.totalorder %s262, %s264
      %p268 = scmp.eq.s32.totalorder %s27, 0
      %p269 = por %p267, %p268
      %p270 = scmp.ne.s32.totalorder %s262, %s264
      %p271 = scmp.eq.s32.totalorder %s32, 1
      %p272 = por %p270, %p271
      %p273 = scmp.ne.s32.totalorder %s264, %s265
      %p274 = scmp.eq.s32.totalorder %s32, 0
      %p275 = por %p273, %p274
      %p276 = scmp.ne.s32.totalorder %s264, %s265
      %p277 = scmp.eq.s32.totalorder %s33, 1
      %p278 = por %p276, %p277
      %p280 = scmp.ne.s32.totalorder %s265, %s279
      %p281 = scmp.eq.s32.totalorder %s33, 0
      %p282 = por %p280, %p281
      %s283 = ssub.s32 %s34, %s46
      %p284 = scmp.eq.s32.totalorder %s283, 0
      %s286 = sadd.s32 %s285, 1
      %s287 = scalar_select %p284, %s285, %s286
      %p290 = pneg %p284
      %p291 = scmp.eq.s32.totalorder %s27, 1
      %p292 = por %p290, %p291
      %p293 = scmp.ne.s32.totalorder %s285, %s288
      %p294 = scmp.eq.s32.totalorder %s27, 0
      %p295 = por %p293, %p294
      %p296 = scmp.ne.s32.totalorder %s285, %s288
      %p297 = scmp.eq.s32.totalorder %s32, 1
      %p298 = por %p296, %p297
      %p299 = scmp.ne.s32.totalorder %s288, %s289
      %p300 = scmp.eq.s32.totalorder %s32, 0
      %p301 = por %p299, %p300
      %p302 = scmp.ne.s32.totalorder %s288, %s289
      %p303 = scmp.eq.s32.totalorder %s33, 1
      %p304 = por %p302, %p303
      %p306 = scmp.ne.s32.totalorder %s289, %s305
      %p307 = scmp.eq.s32.totalorder %s33, 0
      %p308 = por %p306, %p307
      %p309 = scmp.le.s32.totalorder 1, %s27
      %p310 = scmp.lt.s32.totalorder %s27, 3
      %p311 = pnand %p309, %p310
      %p312 = pneg %p311
      // Predicated region
      $region9: #{tpu_custom_call.1} parent=5 // pred_check
        _
      $region10: #{tpu_custom_call.1} parent=5 // pred_check_branch
        %314 = sbr.rel (%p311) target = $region12
      $region11: #{tpu_custom_call.1} parent=5 // pred_region
        %s315 = ssub.s32 %s27, 1
        // Predicated region
        $region13: #{tpu_custom_call.1} parent=11 // pred_check
          %p316 = pneg %p60
        $region14: #{tpu_custom_call.1} parent=11 // pred_check_branch
          %318 = sbr.rel (%p316) target = $region16
        $region15: #{tpu_custom_call.1} parent=11 // pred_region
          %s320 = ssub.s32 16, 16
          %321 = vsyncadd [#allocation5], %s320
          %s323 = sshll.u32 %s0, 4
          %s324 = int_to_ptr.vmem [resolvable:$true] %s323
          %326 = dma.vmem_to_smem %s324, 16, [#allocation2], [#allocation5]
        $region16: #{tpu_custom_call.1} parent=11 // pred_fallthru
          _
        // Predicated region
        $region17: #{tpu_custom_call.1} parent=11 // pred_check
          %p327 = pneg %p81
        $region18: #{tpu_custom_call.1} parent=11 // pred_check_branch
          %329 = sbr.rel (%p327) target = $region20
        $region19: #{tpu_custom_call.1} parent=11 // pred_region
          %s331 = ssub.s32 16, 16
          %332 = vsyncadd [#allocation7], %s331
          %s334 = sshll.u32 %s1, 4
          %s335 = int_to_ptr.vmem [resolvable:$true] %s334
          %337 = dma.vmem_to_smem %s335, 16, [#allocation6], [#allocation7]
        $region20: #{tpu_custom_call.1} parent=11 // pred_fallthru
          _
        // Predicated region
        $region21: #{tpu_custom_call.1} parent=11 // pred_check
          %p338 = pneg %p212
        $region22: #{tpu_custom_call.1} parent=11 // pred_check_branch
          %340 = sbr.rel (%p338) target = $region24
        $region23: #{tpu_custom_call.1} parent=11 // pred_region
          _
        $region24: #{tpu_custom_call.1} parent=11 // pred_fallthru
          _
        // Predicated region
        $region25: #{tpu_custom_call.1} parent=11 // pred_check
          %p341 = pneg %p233
        $region26: #{tpu_custom_call.1} parent=11 // pred_check_branch
          %343 = sbr.rel (%p341) target = $region28
        $region27: #{tpu_custom_call.1} parent=11 // pred_region
          _
        $region28: #{tpu_custom_call.1} parent=11 // pred_fallthru
          _
        // Predicated region
        $region29: #{tpu_custom_call.1} parent=11 // pred_check
          %p344 = pneg %p254
        $region30: #{tpu_custom_call.1} parent=11 // pred_check_branch
          %346 = sbr.rel (%p344) target = $region32
        $region31: #{tpu_custom_call.1} parent=11 // pred_region
          _
        $region32: #{tpu_custom_call.1} parent=11 // pred_fallthru
          _
        // Predicated region
        $region33: #{tpu_custom_call.1} parent=11 // pred_check
          %p347 = pneg %p275
        $region34: #{tpu_custom_call.1} parent=11 // pred_check_branch
          %349 = sbr.rel (%p347) target = $region36
        $region35: #{tpu_custom_call.1} parent=11 // pred_region
          _
        $region36: #{tpu_custom_call.1} parent=11 // pred_fallthru
          _
      $region12: #{tpu_custom_call.1} parent=5 // pred_fallthru
        _
      %p350 = scmp.lt.s32.totalorder %s27, 2
      // Predicated region
      $region37: #{tpu_custom_call.1} parent=5 // pred_check
        %p351 = pneg %p350
      $region38: #{tpu_custom_call.1} parent=5 // pred_check_branch
        %353 = sbr.rel (%p351) target = $region40
      $region39: #{tpu_custom_call.1} parent=5 // pred_region
        // Predicated region
        $region41: #{tpu_custom_call.1} parent=39 // pred_check
          %p354 = pneg %p103
        $region42: #{tpu_custom_call.1} parent=39 // pred_check_branch
          %356 = sbr.rel (%p354) target = $region44
        $region43: #{tpu_custom_call.1} parent=39 // pred_region
          %s357 = smul.u32 16, %s35
          %p358 = scmp.lt.s32.totalorder %s34, 1
          %s359 = scalar_select %p358, %s34, 1
          %p360 = scmp.lt.s32.totalorder %s357, 15
          %s361 = scalar_select %p360, %s357, 15
          %s362 = smul.addr %s359, 16
          %s363 = sadd.s32 %s361, %s362
          %s364 = smul.addr %s363, 4
          %s365 = scalar_lea.vmem %s2, %s364
          %s366 = smul.u32 16, %s35
        $region44: #{tpu_custom_call.1} parent=39 // pred_fallthru
          _
        // Predicated region
        $region45: #{tpu_custom_call.1} parent=39 // pred_check
          %p367 = pneg %p131
        $region46: #{tpu_custom_call.1} parent=39 // pred_check_branch
          %369 = sbr.rel (%p367) target = $region48
        $region47: #{tpu_custom_call.1} parent=39 // pred_region
          %s370 = sand.u32 %s121, 1
          %s371 = scalar_lea.sflag [#allocation3], %s370
          %s372 = sand.u32 %s121, 1
          %s373 = smul.addr %s372, 64
          %s374 = scalar_lea.vmem [#allocation8], %s373
          %s375 = smul.u32 16, %s35
          %s377 = ssub.s32 1024, 1024
          %378 = vsyncadd %s371, %s377
          %s379 = smul.addr %s34, 16
          %s380 = sadd.s32 %s375, %s379
          %s381 = smul.addr %s380, 64
          %s382 = scalar_lea.hbm %s3, %s381
          %s384 = sshll.u32 %s374, 4
          %s385 = int_to_ptr.vmem [resolvable:$true] %s384
          %387 = dma.hbm_to_vmem [thread:$0]  %s382, 1024, %s385, %s371
        $region48: #{tpu_custom_call.1} parent=39 // pred_fallthru
          _
        // Predicated region
        $region49: #{tpu_custom_call.1} parent=39 // pred_check
          %p388 = pneg %p159
        $region50: #{tpu_custom_call.1} parent=39 // pred_check_branch
          %390 = sbr.rel (%p388) target = $region52
        $region51: #{tpu_custom_call.1} parent=39 // pred_region
          %s391 = sand.u32 %s149, 1
          %s392 = scalar_lea.sflag [#allocation10], %s391
          %s393 = sand.u32 %s149, 1
          %s394 = smul.addr %s393, 64
          %s395 = scalar_lea.vmem [#allocation9], %s394
          %s396 = smul.u32 16, %s35
          %s398 = ssub.s32 1024, 1024
          %399 = vsyncadd %s392, %s398
          %s400 = smul.addr %s34, 16
          %s401 = sadd.s32 %s396, %s400
          %s402 = smul.addr %s401, 64
          %s403 = scalar_lea.hbm %s4, %s402
          %s405 = sshll.u32 %s395, 4
          %s406 = int_to_ptr.vmem [resolvable:$true] %s405
          %408 = dma.hbm_to_vmem [thread:$0]  %s403, 1024, %s406, %s392
        $region52: #{tpu_custom_call.1} parent=39 // pred_fallthru
          _
        // Predicated region
        $region53: #{tpu_custom_call.1} parent=39 // pred_check
          %p409 = pneg %p185
        $region54: #{tpu_custom_call.1} parent=39 // pred_check_branch
          %411 = sbr.rel (%p409) target = $region56
        $region55: #{tpu_custom_call.1} parent=39 // pred_region
          %p412 = scmp.lt.s32.totalorder %s34, 1
          %s413 = scalar_select %p412, %s34, 1
          %s414 = smul.addr %s413, 4
          %s415 = smul.addr %s414, 8
          %s416 = scalar_lea.vmem %s5, %s415
        $region56: #{tpu_custom_call.1} parent=39 // pred_fallthru
          _
      $region40: #{tpu_custom_call.1} parent=5 // pred_fallthru
        _
      %p417 = scmp.le.s32.totalorder 1, %s27
      %p418 = scmp.lt.s32.totalorder %s27, 3
      %p419 = pnand %p417, %p418
      %p420 = pneg %p419
      // Predicated region
      $region57: #{tpu_custom_call.1} parent=5 // pred_check
        _
      $region58: #{tpu_custom_call.1} parent=5 // pred_check_branch
        %422 = sbr.rel (%p419) target = $region60
      $region59: #{tpu_custom_call.1} parent=5 // pred_region
        %s423 = ssub.s32 %s27, 1
        // Predicated region
        $region61: #{tpu_custom_call.1} parent=59 // pred_check
          %p424 = pneg %p60
        $region62: #{tpu_custom_call.1} parent=59 // pred_check_branch
          %426 = sbr.rel (%p424) target = $region64
        $region63: #{tpu_custom_call.1} parent=59 // pred_region
          %427 = dma.done [#allocation5], 16
        $region64: #{tpu_custom_call.1} parent=59 // pred_fallthru
          _
        // Predicated region
        $region65: #{tpu_custom_call.1} parent=59 // pred_check
          %p428 = pneg %p81
        $region66: #{tpu_custom_call.1} parent=59 // pred_check_branch
          %430 = sbr.rel (%p428) target = $region68
        $region67: #{tpu_custom_call.1} parent=59 // pred_region
          %431 = dma.done [#allocation7], 16
        $region68: #{tpu_custom_call.1} parent=59 // pred_fallthru
          _
        %s432 = sand.u32 %s124, 1
        %s433 = scalar_lea.sflag [#allocation3], %s432
        %s434 = sand.u32 %s124, 1
        %s435 = smul.addr %s434, 64
        %s436 = scalar_lea.vmem [#allocation8], %s435
        // Predicated region
        $region69: #{tpu_custom_call.1} parent=59 // pred_check
          %p437 = pneg %p137
        $region70: #{tpu_custom_call.1} parent=59 // pred_check_branch
          %439 = sbr.rel (%p437) target = $region72
        $region71: #{tpu_custom_call.1} parent=59 // pred_region
          %440 = dma.done %s433, 1024
        $region72: #{tpu_custom_call.1} parent=59 // pred_fallthru
          _
        %s441 = sand.u32 %s152, 1
        %s442 = scalar_lea.sflag [#allocation10], %s441
        %s443 = sand.u32 %s152, 1
        %s444 = smul.addr %s443, 64
        %s445 = scalar_lea.vmem [#allocation9], %s444
        // Predicated region
        $region73: #{tpu_custom_call.1} parent=59 // pred_check
          %p446 = pneg %p165
        $region74: #{tpu_custom_call.1} parent=59 // pred_check_branch
          %448 = sbr.rel (%p446) target = $region76
        $region75: #{tpu_custom_call.1} parent=59 // pred_region
          %449 = dma.done %s442, 1024
        $region76: #{tpu_custom_call.1} parent=59 // pred_fallthru
          _
        %450 = sfence
        %p451 = pneg %p60
        %p452 = pneg %p57
        %p453 = pneg %p81
        %p454 = pneg %p78
        %s455 = smul.u32 16, %s37
        %p456 = scmp.lt.s32.totalorder %s36, 1
        %s457 = scalar_select %p456, %s36, 1
        %p458 = scmp.lt.s32.totalorder %s455, 15
        %s459 = scalar_select %p458, %s455, 15
        %s460 = smul.addr %s457, 16
        %s461 = sadd.s32 %s459, %s460
        %s462 = smul.addr %s461, 4
        %s463 = scalar_lea.vmem %s2, %s462
        %p464 = pneg %p109
        %p465 = pneg %p106
        %s466 = sand.u32 %s124, 1
        %s467 = scalar_lea.sflag [#allocation3], %s466
        %s468 = sand.u32 %s124, 1
        %s469 = smul.addr %s468, 64
        %s470 = scalar_lea.vmem [#allocation8], %s469
        %p471 = pneg %p137
        %p472 = pneg %p134
        %s473 = sand.u32 %s152, 1
        %s474 = scalar_lea.sflag [#allocation10], %s473
        %s475 = sand.u32 %s152, 1
        %s476 = smul.addr %s475, 64
        %s477 = scalar_lea.vmem [#allocation9], %s476
        %p478 = pneg %p165
        %p479 = pneg %p162
        %p480 = scmp.lt.s32.totalorder %s36, 1
        %s481 = scalar_select %p480, %s36, 1
        %s482 = smul.addr %s481, 4
        %s483 = smul.addr %s482, 8
        %s484 = scalar_lea.vmem %s5, %s483
        %p485 = pneg %p191
        %p486 = pneg %p188
        %p487 = pneg %p212
        %p488 = pneg %p209
        %p489 = pneg %p233
        %p490 = pneg %p230
        %p491 = pneg %p254
        %p492 = pneg %p251
        %p493 = pneg %p275
        %p494 = pneg %p272
        %p495 = pneg %p301
        %p496 = pneg %p298
        %s497 = sand.u32 %s288, 1
        %s498 = scalar_lea.sflag [#allocation4], %s497
        %s499 = sand.u32 %s288, 1
        %s500 = scalar_lea.vmem [#allocation11], %s499
        %s501 = smul.u32 16, %s37
        %p502 = scmp.lt.s32.totalorder %s36, 1
        %s503 = scalar_select %p502, %s36, 1
        %p504 = scmp.lt.s32.totalorder %s501, 15
        %s505 = scalar_select %p504, %s501, 15
        %s506 = smul.addr %s503, 16
        %s507 = sadd.s32 %s505, %s506
        %s508 = smul.addr %s507, 4
        %s509 = scalar_lea.vmem %s2, %s508
        %s510 = smul.u32 16, %s37
        %s511 = smul.u32 16, %s37
        %s512 = smul.u32 16, %s37
        %p513 = scmp.lt.s32.totalorder %s36, 1
        %s514 = scalar_select %p513, %s36, 1
        %s515 = smul.addr %s514, 4
        %s516 = smul.addr %s515, 8
        %s517 = scalar_lea.vmem %s5, %s516
        %p518 = scmp.eq.s32.totalorder %s37, 0
        // Predicated region
        $region77: #{tpu_custom_call.1} parent=59 // pred_check
          %p519 = pneg %p518
        $region78: #{tpu_custom_call.1} parent=59 // pred_check_branch
          %521 = sbr.rel (%p519) target = $region80
        $region79: #{tpu_custom_call.1} parent=59 // pred_region
          %522 = vst [vmem:[%s500] sm:$0x1] 0.0
        $region80: #{tpu_custom_call.1} parent=59 // pred_fallthru
          _
        %s523 = sld [smem:[#allocation2 + %s36]]
        %s524 = sld [smem:[#allocation6 + %s36]]
        %v525 = vld [vmem:[%s509] sm:$0xff]
        %v526 = vld [vmem:[%s509 + $0x8] sm:$0xff]
        %v527 = vld [vmem:[%s509 + $0x10] sm:$0xff]
        %v528 = vld [vmem:[%s509 + $0x18] sm:$0xff]
        %v529 = vld [vmem:[%s509 + $0x20] sm:$0xff]
        %v530 = vld [vmem:[%s509 + $0x28] sm:$0xff]
        %v531 = vld [vmem:[%s509 + $0x30] sm:$0xff]
        %v532 = vld [vmem:[%s509 + $0x38] sm:$0xff]
        %v533 = vld [vmem:[%s436] sm:$0xff]
        %v534 = vld [vmem:[%s436 + $0x8] sm:$0xff]
        %v535 = vld [vmem:[%s436 + $0x10] sm:$0xff]
        %v536 = vld [vmem:[%s436 + $0x18] sm:$0xff]
        %v537 = vld [vmem:[%s436 + $0x20] sm:$0xff]
        %v538 = vld [vmem:[%s436 + $0x28] sm:$0xff]
        %v539 = vld [vmem:[%s436 + $0x30] sm:$0xff]
        %v540 = vld [vmem:[%s436 + $0x38] sm:$0xff]
        %v541 = vld [vmem:[%s445] sm:$0xff]
        %v542 = vld [vmem:[%s445 + $0x8] sm:$0xff]
        %v543 = vld [vmem:[%s445 + $0x10] sm:$0xff]
        %v544 = vld [vmem:[%s445 + $0x18] sm:$0xff]
        %v545 = vld [vmem:[%s445 + $0x20] sm:$0xff]
        %v546 = vld [vmem:[%s445 + $0x28] sm:$0xff]
        %v547 = vld [vmem:[%s445 + $0x30] sm:$0xff]
        %v548 = vld [vmem:[%s445 + $0x38] sm:$0xff]
        %v549 = vstv %s523
        %v550 = vmul.f32 %v549, %v525
        %v551 = vmul.f32 %v549, %v526
        %v552 = vmul.f32 %v549, %v527
        %v553 = vmul.f32 %v549, %v528
        %v554 = vmul.f32 %v549, %v529
        %v555 = vmul.f32 %v549, %v530
        %v556 = vmul.f32 %v549, %v531
        %v557 = vmul.f32 %v549, %v532
        %v558 = vstv %s524
        %v559 = vmul.f32 %v558, %v541
        %v560 = vmul.f32 %v558, %v542
        %v561 = vmul.f32 %v558, %v543
        %v562 = vmul.f32 %v558, %v544
        %v563 = vmul.f32 %v558, %v545
        %v564 = vmul.f32 %v558, %v546
        %v565 = vmul.f32 %v558, %v547
        %v566 = vmul.f32 %v558, %v548
        %v567 = vadd.f32 %v550, %v559
        %v568 = vadd.f32 %v551, %v560
        %v569 = vadd.f32 %v552, %v561
        %v570 = vadd.f32 %v553, %v562
        %v571 = vadd.f32 %v554, %v563
        %v572 = vadd.f32 %v555, %v564
        %v573 = vadd.f32 %v556, %v565
        %v574 = vadd.f32 %v557, %v566
        %v575 = vld [vmem:[%s6] sm:$0xff]
        %v576 = vld [vmem:[%s6 + $0x8] sm:$0xff]
        %v577 = vld [vmem:[%s6 + $0x10] sm:$0xff]
        %v578 = vld [vmem:[%s6 + $0x18] sm:$0xff]
        %v579 = vld [vmem:[%s7] sm:$0xff]
        %v580 = vld [vmem:[%s7 + $0x8] sm:$0xff]
        %v581 = vld [vmem:[%s7 + $0x10] sm:$0xff]
        %v582 = vld [vmem:[%s7 + $0x18] sm:$0xff]
        %v591 = vcombine.high %v533, %v533
        %v592 = vcombine.high %v534, %v534
        %v593 = vcombine.high %v535, %v535
        %v594 = vcombine.high %v536, %v536
        %v595 = vcombine.high %v537, %v537
        %v596 = vcombine.high %v538, %v538
        %v597 = vcombine.high %v539, %v539
        %v598 = vcombine.high %v540, %v540
        %vm599 = vcmask 31744
        %v601 = vsel %vm599, %v579, 0
        %v604 = vsel %vm599, %v580, 0
        %v607 = vsel %vm599, %v581, 0
        %v610 = vsel %vm599, %v582, 0
        %vm612 = vcmask 1043456
        %v613 = vsel %vm612, %v533, 0
        %v615 = vsel %vm612, %v591, 0
        %v617 = vsel %vm612, %v534, 0
        %v619 = vsel %vm612, %v592, 0
        %v621 = vsel %vm612, %v535, 0
        %v623 = vsel %vm612, %v593, 0
        %v625 = vsel %vm612, %v536, 0
        %v627 = vsel %vm612, %v594, 0
        %v629 = vsel %vm612, %v537, 0
        %v631 = vsel %vm612, %v595, 0
        %v633 = vsel %vm612, %v538, 0
        %v635 = vsel %vm612, %v596, 0
        %v637 = vsel %vm612, %v539, 0
        %v639 = vsel %vm612, %v597, 0
        %v641 = vsel %vm612, %v540, 0
        %v643 = vsel %vm612, %v598, 0
        %645 = vmatprep.subr.mxu0 0.0
        %646 = vmatpush1.msra.mxu0 0.0
        %647 = vmatprep.subr.mxu0 0.0
        %648 = vmatpush1.msra.mxu0 0.0
        %649 = vmatprep.subr.mxu0 0.0
        %650 = vmatpush1.msra.mxu0 0.0
        %651 = vmatprep.subr.mxu0 0.0
        %652 = vmatpush1.msra.mxu0 0.0
        %653 = vmatprep.subr.mxu0 0.0
        %654 = vmatpush1.msra.mxu0 0.0
        %655 = vmatprep.subr.mxu0 0.0
        %656 = vmatpush1.msra.mxu0 0.0
        %657 = vmatprep.subr.mxu0 0.0
        %658 = vmatpush1.msra.mxu0 0.0
        %659 = vmatprep.subr.mxu0 0.0
        %660 = vmatpush1.msra.mxu0 0.0
        %661 = vmatprep.subr.mxu0 0.0
        %662 = vmatpush1.msra.mxu0 0.0
        %663 = vmatprep.subr.mxu0 0.0
        %664 = vmatpush1.msra.mxu0 0.0
        %665 = vmatprep.subr.mxu0 0.0
        %666 = vmatpush1.msra.mxu0 0.0
        %667 = vmatprep.subr.mxu0 0.0
        %668 = vmatpush1.msra.mxu0 0.0
        %669 = vmatprep.subr.mxu0 0.0
        %670 = vmatpush1.msra.mxu0 0.0
        %671 = vmatprep.subr.mxu0 0.0
        %672 = vmatpush1.msra.mxu0 0.0
        %673 = vmatprep.subr.mxu0 0.0
        %674 = vmatpush1.msra.mxu0 0.0
        %675 = vmatprep.subr.mxu0 %v615
        %676 = vmatpush1.msra.mxu0 %v613
        %677 = vmatprep.subr.mxu0 0.0
        %678 = vmatpush2.msra.mxu0 0.0
        %679 = vmatprep.subr.mxu0 0.0
        %680 = vmatpush2.msra.mxu0 0.0
        %681 = vmatprep.subr.mxu0 0.0
        %682 = vmatpush2.msra.mxu0 0.0
        %683 = vmatprep.subr.mxu0 0.0
        %684 = vmatpush2.msra.mxu0 0.0
        %685 = vmatprep.subr.mxu0 0.0
        %686 = vmatpush2.msra.mxu0 0.0
        %687 = vmatprep.subr.mxu0 0.0
        %688 = vmatpush2.msra.mxu0 0.0
        %689 = vmatprep.subr.mxu0 0.0
        %690 = vmatpush2.msra.mxu0 0.0
        %691 = vmatprep.subr.mxu0 0.0
        %692 = vmatpush2.msra.mxu0 0.0
        %693 = vmatprep.subr.mxu0 0.0
        %694 = vmatpush2.msra.mxu0 0.0
        %695 = vmatprep.subr.mxu0 0.0
        %696 = vmatpush2.msra.mxu0 0.0
        %697 = vmatprep.subr.mxu0 0.0
        %698 = vmatpush2.msra.mxu0 0.0
        %699 = vmatprep.subr.mxu0 0.0
        %700 = vmatpush2.msra.mxu0 0.0
        %701 = vmatprep.subr.mxu0 0.0
        %702 = vmatpush2.msra.mxu0 0.0
        %703 = vmatprep.subr.mxu0 0.0
        %704 = vmatpush2.msra.mxu0 0.0
        %705 = vmatprep.subr.mxu0 0.0
        %706 = vmatpush2.msra.mxu0 0.0
        %707 = vmatprep.subr.mxu0 0.0
        %708 = vmatpush2.msra.mxu0 0.0
        %709 = vmatprep.mubr.f32.mxu0 0.0
        %710 = vmatmul.mubr.f32.gmra.mxu0 %v601
        %v711 = vpop.f32.mrf.mxu0
        %v712 = vadd.f32 0.0, %v711
        %v713 = vpop.f32.mrf.mxu0
        %v714 = vadd.f32 0.0, %v713
        %715 = vmatprep.mubr.f32.mxu0 0.0
        %716 = vmatmul.mubr.f32.gmra.mxu0 %v604
        %v717 = vpop.f32.mrf.mxu0
        %v718 = vadd.f32 0.0, %v717
        %v719 = vpop.f32.mrf.mxu0
        %v720 = vadd.f32 0.0, %v719
        %721 = vmatprep.mubr.f32.mxu0 0.0
        %722 = vmatmul.mubr.f32.gmra.mxu0 %v607
        %v723 = vpop.f32.mrf.mxu0
        %v724 = vadd.f32 0.0, %v723
        %v725 = vpop.f32.mrf.mxu0
        %v726 = vadd.f32 0.0, %v725
        %727 = vmatprep.mubr.f32.mxu0 0.0
        %728 = vmatmul.mubr.f32.gmra.mxu0 %v610
        %v729 = vpop.f32.mrf.mxu0
        %v730 = vadd.f32 0.0, %v729
        %v731 = vpop.f32.mrf.mxu0
        %v732 = vadd.f32 0.0, %v731
        %733 = vdwg.mxu0
        %734 = vmatprep.subr.mxu0 0.0
        %735 = vmatpush1.msra.mxu0 0.0
        %736 = vmatprep.subr.mxu0 0.0
        %737 = vmatpush1.msra.mxu0 0.0
        %738 = vmatprep.subr.mxu0 0.0
        %739 = vmatpush1.msra.mxu0 0.0
        %740 = vmatprep.subr.mxu0 0.0
        %741 = vmatpush1.msra.mxu0 0.0
        %742 = vmatprep.subr.mxu0 0.0
        %743 = vmatpush1.msra.mxu0 0.0
        %744 = vmatprep.subr.mxu0 0.0
        %745 = vmatpush1.msra.mxu0 0.0
        %746 = vmatprep.subr.mxu0 0.0
        %747 = vmatpush1.msra.mxu0 0.0
        %748 = vmatprep.subr.mxu0 0.0
        %749 = vmatpush1.msra.mxu0 0.0
        %750 = vmatprep.subr.mxu0 0.0
        %751 = vmatpush1.msra.mxu0 0.0
        %752 = vmatprep.subr.mxu0 0.0
        %753 = vmatpush1.msra.mxu0 0.0
        %754 = vmatprep.subr.mxu0 0.0
        %755 = vmatpush1.msra.mxu0 0.0
        %756 = vmatprep.subr.mxu0 0.0
        %757 = vmatpush1.msra.mxu0 0.0
        %758 = vmatprep.subr.mxu0 0.0
        %759 = vmatpush1.msra.mxu0 0.0
        %760 = vmatprep.subr.mxu0 0.0
        %761 = vmatpush1.msra.mxu0 0.0
        %762 = vmatprep.subr.mxu0 0.0
        %763 = vmatpush1.msra.mxu0 0.0
        %764 = vmatprep.subr.mxu0 %v619
        %765 = vmatpush1.msra.mxu0 %v617
        %766 = vmatprep.subr.mxu0 0.0
        %767 = vmatpush2.msra.mxu0 0.0
        %768 = vmatprep.subr.mxu0 0.0
        %769 = vmatpush2.msra.mxu0 0.0
        %770 = vmatprep.subr.mxu0 0.0
        %771 = vmatpush2.msra.mxu0 0.0
        %772 = vmatprep.subr.mxu0 0.0
        %773 = vmatpush2.msra.mxu0 0.0
        %774 = vmatprep.subr.mxu0 0.0
        %775 = vmatpush2.msra.mxu0 0.0
        %776 = vmatprep.subr.mxu0 0.0
        %777 = vmatpush2.msra.mxu0 0.0
        %778 = vmatprep.subr.mxu0 0.0
        %779 = vmatpush2.msra.mxu0 0.0
        %780 = vmatprep.subr.mxu0 0.0
        %781 = vmatpush2.msra.mxu0 0.0
        %782 = vmatprep.subr.mxu0 0.0
        %783 = vmatpush2.msra.mxu0 0.0
        %784 = vmatprep.subr.mxu0 0.0
        %785 = vmatpush2.msra.mxu0 0.0
        %786 = vmatprep.subr.mxu0 0.0
        %787 = vmatpush2.msra.mxu0 0.0
        %788 = vmatprep.subr.mxu0 0.0
        %789 = vmatpush2.msra.mxu0 0.0
        %790 = vmatprep.subr.mxu0 0.0
        %791 = vmatpush2.msra.mxu0 0.0
        %792 = vmatprep.subr.mxu0 0.0
        %793 = vmatpush2.msra.mxu0 0.0
        %794 = vmatprep.subr.mxu0 0.0
        %795 = vmatpush2.msra.mxu0 0.0
        %796 = vmatprep.subr.mxu0 0.0
        %797 = vmatpush2.msra.mxu0 0.0
        %798 = vmatprep.mubr.f32.mxu0 0.0
        %799 = vmatmul.mubr.f32.gmra.mxu0 %v601
        %v800 = vpop.f32.mrf.mxu0
        %v801 = vadd.f32 0.0, %v800
        %v802 = vpop.f32.mrf.mxu0
        %v803 = vadd.f32 0.0, %v802
        %804 = vmatprep.mubr.f32.mxu0 0.0
        %805 = vmatmul.mubr.f32.gmra.mxu0 %v604
        %v806 = vpop.f32.mrf.mxu0
        %v807 = vadd.f32 0.0, %v806
        %v808 = vpop.f32.mrf.mxu0
        %v809 = vadd.f32 0.0, %v808
        %810 = vmatprep.mubr.f32.mxu0 0.0
        %811 = vmatmul.mubr.f32.gmra.mxu0 %v607
        %v812 = vpop.f32.mrf.mxu0
        %v813 = vadd.f32 0.0, %v812
        %v814 = vpop.f32.mrf.mxu0
        %v815 = vadd.f32 0.0, %v814
        %816 = vmatprep.mubr.f32.mxu0 0.0
        %817 = vmatmul.mubr.f32.gmra.mxu0 %v610
        %v818 = vpop.f32.mrf.mxu0
        %v819 = vadd.f32 0.0, %v818
        %v820 = vpop.f32.mrf.mxu0
        %v821 = vadd.f32 0.0, %v820
        %822 = vdwg.mxu0
        %823 = vmatprep.subr.mxu0 0.0
        %824 = vmatpush1.msra.mxu0 0.0
        %825 = vmatprep.subr.mxu0 0.0
        %826 = vmatpush1.msra.mxu0 0.0
        %827 = vmatprep.subr.mxu0 0.0
        %828 = vmatpush1.msra.mxu0 0.0
        %829 = vmatprep.subr.mxu0 0.0
        %830 = vmatpush1.msra.mxu0 0.0
        %831 = vmatprep.subr.mxu0 0.0
        %832 = vmatpush1.msra.mxu0 0.0
        %833 = vmatprep.subr.mxu0 0.0
        %834 = vmatpush1.msra.mxu0 0.0
        %835 = vmatprep.subr.mxu0 0.0
        %836 = vmatpush1.msra.mxu0 0.0
        %837 = vmatprep.subr.mxu0 0.0
        %838 = vmatpush1.msra.mxu0 0.0
        %839 = vmatprep.subr.mxu0 0.0
        %840 = vmatpush1.msra.mxu0 0.0
        %841 = vmatprep.subr.mxu0 0.0
        %842 = vmatpush1.msra.mxu0 0.0
        %843 = vmatprep.subr.mxu0 0.0
        %844 = vmatpush1.msra.mxu0 0.0
        %845 = vmatprep.subr.mxu0 0.0
        %846 = vmatpush1.msra.mxu0 0.0
        %847 = vmatprep.subr.mxu0 0.0
        %848 = vmatpush1.msra.mxu0 0.0
        %849 = vmatprep.subr.mxu0 0.0
        %850 = vmatpush1.msra.mxu0 0.0
        %851 = vmatprep.subr.mxu0 0.0
        %852 = vmatpush1.msra.mxu0 0.0
        %853 = vmatprep.subr.mxu0 %v623
        %854 = vmatpush1.msra.mxu0 %v621
        %855 = vmatprep.subr.mxu0 0.0
        %856 = vmatpush2.msra.mxu0 0.0
        %857 = vmatprep.subr.mxu0 0.0
        %858 = vmatpush2.msra.mxu0 0.0
        %859 = vmatprep.subr.mxu0 0.0
        %860 = vmatpush2.msra.mxu0 0.0
        %861 = vmatprep.subr.mxu0 0.0
        %862 = vmatpush2.msra.mxu0 0.0
        %863 = vmatprep.subr.mxu0 0.0
        %864 = vmatpush2.msra.mxu0 0.0
        %865 = vmatprep.subr.mxu0 0.0
        %866 = vmatpush2.msra.mxu0 0.0
        %867 = vmatprep.subr.mxu0 0.0
        %868 = vmatpush2.msra.mxu0 0.0
        %869 = vmatprep.subr.mxu0 0.0
        %870 = vmatpush2.msra.mxu0 0.0
        %871 = vmatprep.subr.mxu0 0.0
        %872 = vmatpush2.msra.mxu0 0.0
        %873 = vmatprep.subr.mxu0 0.0
        %874 = vmatpush2.msra.mxu0 0.0
        %875 = vmatprep.subr.mxu0 0.0
        %876 = vmatpush2.msra.mxu0 0.0
        %877 = vmatprep.subr.mxu0 0.0
        %878 = vmatpush2.msra.mxu0 0.0
        %879 = vmatprep.subr.mxu0 0.0
        %880 = vmatpush2.msra.mxu0 0.0
        %881 = vmatprep.subr.mxu0 0.0
        %882 = vmatpush2.msra.mxu0 0.0
        %883 = vmatprep.subr.mxu0 0.0
        %884 = vmatpush2.msra.mxu0 0.0
        %885 = vmatprep.subr.mxu0 0.0
        %886 = vmatpush2.msra.mxu0 0.0
        %887 = vmatprep.mubr.f32.mxu0 0.0
        %888 = vmatmul.mubr.f32.gmra.mxu0 %v601
        %v889 = vpop.f32.mrf.mxu0
        %v890 = vadd.f32 0.0, %v889
        %v891 = vpop.f32.mrf.mxu0
        %v892 = vadd.f32 0.0, %v891
        %893 = vmatprep.mubr.f32.mxu0 0.0
        %894 = vmatmul.mubr.f32.gmra.mxu0 %v604
        %v895 = vpop.f32.mrf.mxu0
        %v896 = vadd.f32 0.0, %v895
        %v897 = vpop.f32.mrf.mxu0
        %v898 = vadd.f32 0.0, %v897
        %899 = vmatprep.mubr.f32.mxu0 0.0
        %900 = vmatmul.mubr.f32.gmra.mxu0 %v607
        %v901 = vpop.f32.mrf.mxu0
        %v902 = vadd.f32 0.0, %v901
        %v903 = vpop.f32.mrf.mxu0
        %v904 = vadd.f32 0.0, %v903
        %905 = vmatprep.mubr.f32.mxu0 0.0
        %906 = vmatmul.mubr.f32.gmra.mxu0 %v610
        %v907 = vpop.f32.mrf.mxu0
        %v908 = vadd.f32 0.0, %v907
        %v909 = vpop.f32.mrf.mxu0
        %v910 = vadd.f32 0.0, %v909
        %911 = vdwg.mxu0
        %912 = vmatprep.subr.mxu0 0.0
        %913 = vmatpush1.msra.mxu0 0.0
        %914 = vmatprep.subr.mxu0 0.0
        %915 = vmatpush1.msra.mxu0 0.0
        %916 = vmatprep.subr.mxu0 0.0
        %917 = vmatpush1.msra.mxu0 0.0
        %918 = vmatprep.subr.mxu0 0.0
        %919 = vmatpush1.msra.mxu0 0.0
        %920 = vmatprep.subr.mxu0 0.0
        %921 = vmatpush1.msra.mxu0 0.0
        %922 = vmatprep.subr.mxu0 0.0
        %923 = vmatpush1.msra.mxu0 0.0
        %924 = vmatprep.subr.mxu0 0.0
        %925 = vmatpush1.msra.mxu0 0.0
        %926 = vmatprep.subr.mxu0 0.0
        %927 = vmatpush1.msra.mxu0 0.0
        %928 = vmatprep.subr.mxu0 0.0
        %929 = vmatpush1.msra.mxu0 0.0
        %930 = vmatprep.subr.mxu0 0.0
        %931 = vmatpush1.msra.mxu0 0.0
        %932 = vmatprep.subr.mxu0 0.0
        %933 = vmatpush1.msra.mxu0 0.0
        %934 = vmatprep.subr.mxu0 0.0
        %935 = vmatpush1.msra.mxu0 0.0
        %936 = vmatprep.subr.mxu0 0.0
        %937 = vmatpush1.msra.mxu0 0.0
        %938 = vmatprep.subr.mxu0 0.0
        %939 = vmatpush1.msra.mxu0 0.0
        %940 = vmatprep.subr.mxu0 0.0
        %941 = vmatpush1.msra.mxu0 0.0
        %942 = vmatprep.subr.mxu0 %v627
        %943 = vmatpush1.msra.mxu0 %v625
        %944 = vmatprep.subr.mxu0 0.0
        %945 = vmatpush2.msra.mxu0 0.0
        %946 = vmatprep.subr.mxu0 0.0
        %947 = vmatpush2.msra.mxu0 0.0
        %948 = vmatprep.subr.mxu0 0.0
        %949 = vmatpush2.msra.mxu0 0.0
        %950 = vmatprep.subr.mxu0 0.0
        %951 = vmatpush2.msra.mxu0 0.0
        %952 = vmatprep.subr.mxu0 0.0
        %953 = vmatpush2.msra.mxu0 0.0
        %954 = vmatprep.subr.mxu0 0.0
        %955 = vmatpush2.msra.mxu0 0.0
        %956 = vmatprep.subr.mxu0 0.0
        %957 = vmatpush2.msra.mxu0 0.0
        %958 = vmatprep.subr.mxu0 0.0
        %959 = vmatpush2.msra.mxu0 0.0
        %960 = vmatprep.subr.mxu0 0.0
        %961 = vmatpush2.msra.mxu0 0.0
        %962 = vmatprep.subr.mxu0 0.0
        %963 = vmatpush2.msra.mxu0 0.0
        %964 = vmatprep.subr.mxu0 0.0
        %965 = vmatpush2.msra.mxu0 0.0
        %966 = vmatprep.subr.mxu0 0.0
        %967 = vmatpush2.msra.mxu0 0.0
        %968 = vmatprep.subr.mxu0 0.0
        %969 = vmatpush2.msra.mxu0 0.0
        %970 = vmatprep.subr.mxu0 0.0
        %971 = vmatpush2.msra.mxu0 0.0
        %972 = vmatprep.subr.mxu0 0.0
        %973 = vmatpush2.msra.mxu0 0.0
        %974 = vmatprep.subr.mxu0 0.0
        %975 = vmatpush2.msra.mxu0 0.0
        %976 = vmatprep.mubr.f32.mxu0 0.0
        %977 = vmatmul.mubr.f32.gmra.mxu0 %v601
        %v978 = vpop.f32.mrf.mxu0
        %v979 = vadd.f32 0.0, %v978
        %v980 = vpop.f32.mrf.mxu0
        %v981 = vadd.f32 0.0, %v980
        %982 = vmatprep.mubr.f32.mxu0 0.0
        %983 = vmatmul.mubr.f32.gmra.mxu0 %v604
        %v984 = vpop.f32.mrf.mxu0
        %v985 = vadd.f32 0.0, %v984
        %v986 = vpop.f32.mrf.mxu0
        %v987 = vadd.f32 0.0, %v986
        %988 = vmatprep.mubr.f32.mxu0 0.0
        %989 = vmatmul.mubr.f32.gmra.mxu0 %v607
        %v990 = vpop.f32.mrf.mxu0
        %v991 = vadd.f32 0.0, %v990
        %v992 = vpop.f32.mrf.mxu0
        %v993 = vadd.f32 0.0, %v992
        %994 = vmatprep.mubr.f32.mxu0 0.0
        %995 = vmatmul.mubr.f32.gmra.mxu0 %v610
        %v996 = vpop.f32.mrf.mxu0
        %v997 = vadd.f32 0.0, %v996
        %v998 = vpop.f32.mrf.mxu0
        %v999 = vadd.f32 0.0, %v998
        %1000 = vdwg.mxu0
        %1001 = vmatprep.subr.mxu0 0.0
        %1002 = vmatpush1.msra.mxu0 0.0
        %1003 = vmatprep.subr.mxu0 0.0
        %1004 = vmatpush1.msra.mxu0 0.0
        %1005 = vmatprep.subr.mxu0 0.0
        %1006 = vmatpush1.msra.mxu0 0.0
        %1007 = vmatprep.subr.mxu0 0.0
        %1008 = vmatpush1.msra.mxu0 0.0
        %1009 = vmatprep.subr.mxu0 0.0
        %1010 = vmatpush1.msra.mxu0 0.0
        %1011 = vmatprep.subr.mxu0 0.0
        %1012 = vmatpush1.msra.mxu0 0.0
        %1013 = vmatprep.subr.mxu0 0.0
        %1014 = vmatpush1.msra.mxu0 0.0
        %1015 = vmatprep.subr.mxu0 0.0
        %1016 = vmatpush1.msra.mxu0 0.0
        %1017 = vmatprep.subr.mxu0 0.0
        %1018 = vmatpush1.msra.mxu0 0.0
        %1019 = vmatprep.subr.mxu0 0.0
        %1020 = vmatpush1.msra.mxu0 0.0
        %1021 = vmatprep.subr.mxu0 0.0
        %1022 = vmatpush1.msra.mxu0 0.0
        %1023 = vmatprep.subr.mxu0 0.0
        %1024 = vmatpush1.msra.mxu0 0.0
        %1025 = vmatprep.subr.mxu0 0.0
        %1026 = vmatpush1.msra.mxu0 0.0
        %1027 = vmatprep.subr.mxu0 0.0
        %1028 = vmatpush1.msra.mxu0 0.0
        %1029 = vmatprep.subr.mxu0 0.0
        %1030 = vmatpush1.msra.mxu0 0.0
        %1031 = vmatprep.subr.mxu0 %v631
        %1032 = vmatpush1.msra.mxu0 %v629
        %1033 = vmatprep.subr.mxu0 0.0
        %1034 = vmatpush2.msra.mxu0 0.0
        %1035 = vmatprep.subr.mxu0 0.0
        %1036 = vmatpush2.msra.mxu0 0.0
        %1037 = vmatprep.subr.mxu0 0.0
        %1038 = vmatpush2.msra.mxu0 0.0
        %1039 = vmatprep.subr.mxu0 0.0
        %1040 = vmatpush2.msra.mxu0 0.0
        %1041 = vmatprep.subr.mxu0 0.0
        %1042 = vmatpush2.msra.mxu0 0.0
        %1043 = vmatprep.subr.mxu0 0.0
        %1044 = vmatpush2.msra.mxu0 0.0
        %1045 = vmatprep.subr.mxu0 0.0
        %1046 = vmatpush2.msra.mxu0 0.0
        %1047 = vmatprep.subr.mxu0 0.0
        %1048 = vmatpush2.msra.mxu0 0.0
        %1049 = vmatprep.subr.mxu0 0.0
        %1050 = vmatpush2.msra.mxu0 0.0
        %1051 = vmatprep.subr.mxu0 0.0
        %1052 = vmatpush2.msra.mxu0 0.0
        %1053 = vmatprep.subr.mxu0 0.0
        %1054 = vmatpush2.msra.mxu0 0.0
        %1055 = vmatprep.subr.mxu0 0.0
        %1056 = vmatpush2.msra.mxu0 0.0
        %1057 = vmatprep.subr.mxu0 0.0
        %1058 = vmatpush2.msra.mxu0 0.0
        %1059 = vmatprep.subr.mxu0 0.0
        %1060 = vmatpush2.msra.mxu0 0.0
        %1061 = vmatprep.subr.mxu0 0.0
        %1062 = vmatpush2.msra.mxu0 0.0
        %1063 = vmatprep.subr.mxu0 0.0
        %1064 = vmatpush2.msra.mxu0 0.0
        %1065 = vmatprep.mubr.f32.mxu0 0.0
        %1066 = vmatmul.mubr.f32.gmra.mxu0 %v601
        %v1067 = vpop.f32.mrf.mxu0
        %v1068 = vadd.f32 0.0, %v1067
        %v1069 = vpop.f32.mrf.mxu0
        %v1070 = vadd.f32 0.0, %v1069
        %1071 = vmatprep.mubr.f32.mxu0 0.0
        %1072 = vmatmul.mubr.f32.gmra.mxu0 %v604
        %v1073 = vpop.f32.mrf.mxu0
        %v1074 = vadd.f32 0.0, %v1073
        %v1075 = vpop.f32.mrf.mxu0
        %v1076 = vadd.f32 0.0, %v1075
        %1077 = vmatprep.mubr.f32.mxu0 0.0
        %1078 = vmatmul.mubr.f32.gmra.mxu0 %v607
        %v1079 = vpop.f32.mrf.mxu0
        %v1080 = vadd.f32 0.0, %v1079
        %v1081 = vpop.f32.mrf.mxu0
        %v1082 = vadd.f32 0.0, %v1081
        %1083 = vmatprep.mubr.f32.mxu0 0.0
        %1084 = vmatmul.mubr.f32.gmra.mxu0 %v610
        %v1085 = vpop.f32.mrf.mxu0
        %v1086 = vadd.f32 0.0, %v1085
        %v1087 = vpop.f32.mrf.mxu0
        %v1088 = vadd.f32 0.0, %v1087
        %1089 = vdwg.mxu0
        %1090 = vmatprep.subr.mxu0 0.0
        %1091 = vmatpush1.msra.mxu0 0.0
        %1092 = vmatprep.subr.mxu0 0.0
        %1093 = vmatpush1.msra.mxu0 0.0
        %1094 = vmatprep.subr.mxu0 0.0
        %1095 = vmatpush1.msra.mxu0 0.0
        %1096 = vmatprep.subr.mxu0 0.0
        %1097 = vmatpush1.msra.mxu0 0.0
        %1098 = vmatprep.subr.mxu0 0.0
        %1099 = vmatpush1.msra.mxu0 0.0
        %1100 = vmatprep.subr.mxu0 0.0
        %1101 = vmatpush1.msra.mxu0 0.0
        %1102 = vmatprep.subr.mxu0 0.0
        %1103 = vmatpush1.msra.mxu0 0.0
        %1104 = vmatprep.subr.mxu0 0.0
        %1105 = vmatpush1.msra.mxu0 0.0
        %1106 = vmatprep.subr.mxu0 0.0
        %1107 = vmatpush1.msra.mxu0 0.0
        %1108 = vmatprep.subr.mxu0 0.0
        %1109 = vmatpush1.msra.mxu0 0.0
        %1110 = vmatprep.subr.mxu0 0.0
        %1111 = vmatpush1.msra.mxu0 0.0
        %1112 = vmatprep.subr.mxu0 0.0
        %1113 = vmatpush1.msra.mxu0 0.0
        %1114 = vmatprep.subr.mxu0 0.0
        %1115 = vmatpush1.msra.mxu0 0.0
        %1116 = vmatprep.subr.mxu0 0.0
        %1117 = vmatpush1.msra.mxu0 0.0
        %1118 = vmatprep.subr.mxu0 0.0
        %1119 = vmatpush1.msra.mxu0 0.0
        %1120 = vmatprep.subr.mxu0 %v635
        %1121 = vmatpush1.msra.mxu0 %v633
        %1122 = vmatprep.subr.mxu0 0.0
        %1123 = vmatpush2.msra.mxu0 0.0
        %1124 = vmatprep.subr.mxu0 0.0
        %1125 = vmatpush2.msra.mxu0 0.0
        %1126 = vmatprep.subr.mxu0 0.0
        %1127 = vmatpush2.msra.mxu0 0.0
        %1128 = vmatprep.subr.mxu0 0.0
        %1129 = vmatpush2.msra.mxu0 0.0
        %1130 = vmatprep.subr.mxu0 0.0
        %1131 = vmatpush2.msra.mxu0 0.0
        %1132 = vmatprep.subr.mxu0 0.0
        %1133 = vmatpush2.msra.mxu0 0.0
        %1134 = vmatprep.subr.mxu0 0.0
        %1135 = vmatpush2.msra.mxu0 0.0
        %1136 = vmatprep.subr.mxu0 0.0
        %1137 = vmatpush2.msra.mxu0 0.0
        %1138 = vmatprep.subr.mxu0 0.0
        %1139 = vmatpush2.msra.mxu0 0.0
        %1140 = vmatprep.subr.mxu0 0.0
        %1141 = vmatpush2.msra.mxu0 0.0
        %1142 = vmatprep.subr.mxu0 0.0
        %1143 = vmatpush2.msra.mxu0 0.0
        %1144 = vmatprep.subr.mxu0 0.0
        %1145 = vmatpush2.msra.mxu0 0.0
        %1146 = vmatprep.subr.mxu0 0.0
        %1147 = vmatpush2.msra.mxu0 0.0
        %1148 = vmatprep.subr.mxu0 0.0
        %1149 = vmatpush2.msra.mxu0 0.0
        %1150 = vmatprep.subr.mxu0 0.0
        %1151 = vmatpush2.msra.mxu0 0.0
        %1152 = vmatprep.subr.mxu0 0.0
        %1153 = vmatpush2.msra.mxu0 0.0
        %1154 = vmatprep.mubr.f32.mxu0 0.0
        %1155 = vmatmul.mubr.f32.gmra.mxu0 %v601
        %v1156 = vpop.f32.mrf.mxu0
        %v1157 = vadd.f32 0.0, %v1156
        %v1158 = vpop.f32.mrf.mxu0
        %v1159 = vadd.f32 0.0, %v1158
        %1160 = vmatprep.mubr.f32.mxu0 0.0
        %1161 = vmatmul.mubr.f32.gmra.mxu0 %v604
        %v1162 = vpop.f32.mrf.mxu0
        %v1163 = vadd.f32 0.0, %v1162
        %v1164 = vpop.f32.mrf.mxu0
        %v1165 = vadd.f32 0.0, %v1164
        %1166 = vmatprep.mubr.f32.mxu0 0.0
        %1167 = vmatmul.mubr.f32.gmra.mxu0 %v607
        %v1168 = vpop.f32.mrf.mxu0
        %v1169 = vadd.f32 0.0, %v1168
        %v1170 = vpop.f32.mrf.mxu0
        %v1171 = vadd.f32 0.0, %v1170
        %1172 = vmatprep.mubr.f32.mxu0 0.0
        %1173 = vmatmul.mubr.f32.gmra.mxu0 %v610
        %v1174 = vpop.f32.mrf.mxu0
        %v1175 = vadd.f32 0.0, %v1174
        %v1176 = vpop.f32.mrf.mxu0
        %v1177 = vadd.f32 0.0, %v1176
        %1178 = vdwg.mxu0
        %1179 = vmatprep.subr.mxu0 0.0
        %1180 = vmatpush1.msra.mxu0 0.0
        %1181 = vmatprep.subr.mxu0 0.0
        %1182 = vmatpush1.msra.mxu0 0.0
        %1183 = vmatprep.subr.mxu0 0.0
        %1184 = vmatpush1.msra.mxu0 0.0
        %1185 = vmatprep.subr.mxu0 0.0
        %1186 = vmatpush1.msra.mxu0 0.0
        %1187 = vmatprep.subr.mxu0 0.0
        %1188 = vmatpush1.msra.mxu0 0.0
        %1189 = vmatprep.subr.mxu0 0.0
        %1190 = vmatpush1.msra.mxu0 0.0
        %1191 = vmatprep.subr.mxu0 0.0
        %1192 = vmatpush1.msra.mxu0 0.0
        %1193 = vmatprep.subr.mxu0 0.0
        %1194 = vmatpush1.msra.mxu0 0.0
        %1195 = vmatprep.subr.mxu0 0.0
        %1196 = vmatpush1.msra.mxu0 0.0
        %1197 = vmatprep.subr.mxu0 0.0
        %1198 = vmatpush1.msra.mxu0 0.0
        %1199 = vmatprep.subr.mxu0 0.0
        %1200 = vmatpush1.msra.mxu0 0.0
        %1201 = vmatprep.subr.mxu0 0.0
        %1202 = vmatpush1.msra.mxu0 0.0
        %1203 = vmatprep.subr.mxu0 0.0
        %1204 = vmatpush1.msra.mxu0 0.0
        %1205 = vmatprep.subr.mxu0 0.0
        %1206 = vmatpush1.msra.mxu0 0.0
        %1207 = vmatprep.subr.mxu0 0.0
        %1208 = vmatpush1.msra.mxu0 0.0
        %1209 = vmatprep.subr.mxu0 %v639
        %1210 = vmatpush1.msra.mxu0 %v637
        %1211 = vmatprep.subr.mxu0 0.0
        %1212 = vmatpush2.msra.mxu0 0.0
        %1213 = vmatprep.subr.mxu0 0.0
        %1214 = vmatpush2.msra.mxu0 0.0
        %1215 = vmatprep.subr.mxu0 0.0
        %1216 = vmatpush2.msra.mxu0 0.0
        %1217 = vmatprep.subr.mxu0 0.0
        %1218 = vmatpush2.msra.mxu0 0.0
        %1219 = vmatprep.subr.mxu0 0.0
        %1220 = vmatpush2.msra.mxu0 0.0
        %1221 = vmatprep.subr.mxu0 0.0
        %1222 = vmatpush2.msra.mxu0 0.0
        %1223 = vmatprep.subr.mxu0 0.0
        %1224 = vmatpush2.msra.mxu0 0.0
        %1225 = vmatprep.subr.mxu0 0.0
        %1226 = vmatpush2.msra.mxu0 0.0
        %1227 = vmatprep.subr.mxu0 0.0
        %1228 = vmatpush2.msra.mxu0 0.0
        %1229 = vmatprep.subr.mxu0 0.0
        %1230 = vmatpush2.msra.mxu0 0.0
        %1231 = vmatprep.subr.mxu0 0.0
        %1232 = vmatpush2.msra.mxu0 0.0
        %1233 = vmatprep.subr.mxu0 0.0
        %1234 = vmatpush2.msra.mxu0 0.0
        %1235 = vmatprep.subr.mxu0 0.0
        %1236 = vmatpush2.msra.mxu0 0.0
        %1237 = vmatprep.subr.mxu0 0.0
        %1238 = vmatpush2.msra.mxu0 0.0
        %1239 = vmatprep.subr.mxu0 0.0
        %1240 = vmatpush2.msra.mxu0 0.0
        %1241 = vmatprep.subr.mxu0 0.0
        %1242 = vmatpush2.msra.mxu0 0.0
        %1243 = vmatprep.mubr.f32.mxu0 0.0
        %1244 = vmatmul.mubr.f32.gmra.mxu0 %v601
        %v1245 = vpop.f32.mrf.mxu0
        %v1246 = vadd.f32 0.0, %v1245
        %v1247 = vpop.f32.mrf.mxu0
        %v1248 = vadd.f32 0.0, %v1247
        %1249 = vmatprep.mubr.f32.mxu0 0.0
        %1250 = vmatmul.mubr.f32.gmra.mxu0 %v604
        %v1251 = vpop.f32.mrf.mxu0
        %v1252 = vadd.f32 0.0, %v1251
        %v1253 = vpop.f32.mrf.mxu0
        %v1254 = vadd.f32 0.0, %v1253
        %1255 = vmatprep.mubr.f32.mxu0 0.0
        %1256 = vmatmul.mubr.f32.gmra.mxu0 %v607
        %v1257 = vpop.f32.mrf.mxu0
        %v1258 = vadd.f32 0.0, %v1257
        %v1259 = vpop.f32.mrf.mxu0
        %v1260 = vadd.f32 0.0, %v1259
        %1261 = vmatprep.mubr.f32.mxu0 0.0
        %1262 = vmatmul.mubr.f32.gmra.mxu0 %v610
        %v1263 = vpop.f32.mrf.mxu0
        %v1264 = vadd.f32 0.0, %v1263
        %v1265 = vpop.f32.mrf.mxu0
        %v1266 = vadd.f32 0.0, %v1265
        %1267 = vdwg.mxu0
        %1268 = vmatprep.subr.mxu0 0.0
        %1269 = vmatpush1.msra.mxu0 0.0
        %1270 = vmatprep.subr.mxu0 0.0
        %1271 = vmatpush1.msra.mxu0 0.0
        %1272 = vmatprep.subr.mxu0 0.0
        %1273 = vmatpush1.msra.mxu0 0.0
        %1274 = vmatprep.subr.mxu0 0.0
        %1275 = vmatpush1.msra.mxu0 0.0
        %1276 = vmatprep.subr.mxu0 0.0
        %1277 = vmatpush1.msra.mxu0 0.0
        %1278 = vmatprep.subr.mxu0 0.0
        %1279 = vmatpush1.msra.mxu0 0.0
        %1280 = vmatprep.subr.mxu0 0.0
        %1281 = vmatpush1.msra.mxu0 0.0
        %1282 = vmatprep.subr.mxu0 0.0
        %1283 = vmatpush1.msra.mxu0 0.0
        %1284 = vmatprep.subr.mxu0 0.0
        %1285 = vmatpush1.msra.mxu0 0.0
        %1286 = vmatprep.subr.mxu0 0.0
        %1287 = vmatpush1.msra.mxu0 0.0
        %1288 = vmatprep.subr.mxu0 0.0
        %1289 = vmatpush1.msra.mxu0 0.0
        %1290 = vmatprep.subr.mxu0 0.0
        %1291 = vmatpush1.msra.mxu0 0.0
        %1292 = vmatprep.subr.mxu0 0.0
        %1293 = vmatpush1.msra.mxu0 0.0
        %1294 = vmatprep.subr.mxu0 0.0
        %1295 = vmatpush1.msra.mxu0 0.0
        %1296 = vmatprep.subr.mxu0 0.0
        %1297 = vmatpush1.msra.mxu0 0.0
        %1298 = vmatprep.subr.mxu0 %v643
        %1299 = vmatpush1.msra.mxu0 %v641
        %1300 = vmatprep.subr.mxu0 0.0
        %1301 = vmatpush2.msra.mxu0 0.0
        %1302 = vmatprep.subr.mxu0 0.0
        %1303 = vmatpush2.msra.mxu0 0.0
        %1304 = vmatprep.subr.mxu0 0.0
        %1305 = vmatpush2.msra.mxu0 0.0
        %1306 = vmatprep.subr.mxu0 0.0
        %1307 = vmatpush2.msra.mxu0 0.0
        %1308 = vmatprep.subr.mxu0 0.0
        %1309 = vmatpush2.msra.mxu0 0.0
        %1310 = vmatprep.subr.mxu0 0.0
        %1311 = vmatpush2.msra.mxu0 0.0
        %1312 = vmatprep.subr.mxu0 0.0
        %1313 = vmatpush2.msra.mxu0 0.0
        %1314 = vmatprep.subr.mxu0 0.0
        %1315 = vmatpush2.msra.mxu0 0.0
        %1316 = vmatprep.subr.mxu0 0.0
        %1317 = vmatpush2.msra.mxu0 0.0
        %1318 = vmatprep.subr.mxu0 0.0
        %1319 = vmatpush2.msra.mxu0 0.0
        %1320 = vmatprep.subr.mxu0 0.0
        %1321 = vmatpush2.msra.mxu0 0.0
        %1322 = vmatprep.subr.mxu0 0.0
        %1323 = vmatpush2.msra.mxu0 0.0
        %1324 = vmatprep.subr.mxu0 0.0
        %1325 = vmatpush2.msra.mxu0 0.0
        %1326 = vmatprep.subr.mxu0 0.0
        %1327 = vmatpush2.msra.mxu0 0.0
        %1328 = vmatprep.subr.mxu0 0.0
        %1329 = vmatpush2.msra.mxu0 0.0
        %1330 = vmatprep.subr.mxu0 0.0
        %1331 = vmatpush2.msra.mxu0 0.0
        %1332 = vmatprep.mubr.f32.mxu0 0.0
        %1333 = vmatmul.mubr.f32.gmra.mxu0 %v601
        %v1334 = vpop.f32.mrf.mxu0
        %v1335 = vadd.f32 0.0, %v1334
        %v1336 = vpop.f32.mrf.mxu0
        %v1337 = vadd.f32 0.0, %v1336
        %1338 = vmatprep.mubr.f32.mxu0 0.0
        %1339 = vmatmul.mubr.f32.gmra.mxu0 %v604
        %v1340 = vpop.f32.mrf.mxu0
        %v1341 = vadd.f32 0.0, %v1340
        %v1342 = vpop.f32.mrf.mxu0
        %v1343 = vadd.f32 0.0, %v1342
        %1344 = vmatprep.mubr.f32.mxu0 0.0
        %1345 = vmatmul.mubr.f32.gmra.mxu0 %v607
        %v1346 = vpop.f32.mrf.mxu0
        %v1347 = vadd.f32 0.0, %v1346
        %v1348 = vpop.f32.mrf.mxu0
        %v1349 = vadd.f32 0.0, %v1348
        %1350 = vmatprep.mubr.f32.mxu0 0.0
        %1351 = vmatmul.mubr.f32.gmra.mxu0 %v610
        %v1352 = vpop.f32.mrf.mxu0
        %v1353 = vadd.f32 0.0, %v1352
        %v1354 = vpop.f32.mrf.mxu0
        %v1355 = vadd.f32 0.0, %v1354
        %1356 = vdwg.mxu0
        %v1365 = vcombine.high %v567, %v567
        %v1366 = vcombine.high %v568, %v568
        %v1367 = vcombine.high %v569, %v569
        %v1368 = vcombine.high %v570, %v570
        %v1369 = vcombine.high %v571, %v571
        %v1370 = vcombine.high %v572, %v572
        %v1371 = vcombine.high %v573, %v573
        %v1372 = vcombine.high %v574, %v574
        %v1374 = vsel %vm599, %v575, 0
        %v1377 = vsel %vm599, %v576, 0
        %v1380 = vsel %vm599, %v577, 0
        %v1383 = vsel %vm599, %v578, 0
        %v1385 = vsel %vm612, %v567, 0
        %v1387 = vsel %vm612, %v1365, 0
        %v1389 = vsel %vm612, %v568, 0
        %v1391 = vsel %vm612, %v1366, 0
        %v1393 = vsel %vm612, %v569, 0
        %v1395 = vsel %vm612, %v1367, 0
        %v1397 = vsel %vm612, %v570, 0
        %v1399 = vsel %vm612, %v1368, 0
        %v1401 = vsel %vm612, %v571, 0
        %v1403 = vsel %vm612, %v1369, 0
        %v1405 = vsel %vm612, %v572, 0
        %v1407 = vsel %vm612, %v1370, 0
        %v1409 = vsel %vm612, %v573, 0
        %v1411 = vsel %vm612, %v1371, 0
        %v1413 = vsel %vm612, %v574, 0
        %v1415 = vsel %vm612, %v1372, 0
        %1417 = vmatprep.subr.mxu0 0.0
        %1418 = vmatpush1.msra.mxu0 0.0
        %1419 = vmatprep.subr.mxu0 0.0
        %1420 = vmatpush1.msra.mxu0 0.0
        %1421 = vmatprep.subr.mxu0 0.0
        %1422 = vmatpush1.msra.mxu0 0.0
        %1423 = vmatprep.subr.mxu0 0.0
        %1424 = vmatpush1.msra.mxu0 0.0
        %1425 = vmatprep.subr.mxu0 0.0
        %1426 = vmatpush1.msra.mxu0 0.0
        %1427 = vmatprep.subr.mxu0 0.0
        %1428 = vmatpush1.msra.mxu0 0.0
        %1429 = vmatprep.subr.mxu0 0.0
        %1430 = vmatpush1.msra.mxu0 0.0
        %1431 = vmatprep.subr.mxu0 0.0
        %1432 = vmatpush1.msra.mxu0 0.0
        %1433 = vmatprep.subr.mxu0 0.0
        %1434 = vmatpush1.msra.mxu0 0.0
        %1435 = vmatprep.subr.mxu0 0.0
        %1436 = vmatpush1.msra.mxu0 0.0
        %1437 = vmatprep.subr.mxu0 0.0
        %1438 = vmatpush1.msra.mxu0 0.0
        %1439 = vmatprep.subr.mxu0 0.0
        %1440 = vmatpush1.msra.mxu0 0.0
        %1441 = vmatprep.subr.mxu0 0.0
        %1442 = vmatpush1.msra.mxu0 0.0
        %1443 = vmatprep.subr.mxu0 0.0
        %1444 = vmatpush1.msra.mxu0 0.0
        %1445 = vmatprep.subr.mxu0 0.0
        %1446 = vmatpush1.msra.mxu0 0.0
        %1447 = vmatprep.subr.mxu0 %v1387
        %1448 = vmatpush1.msra.mxu0 %v1385
        %1449 = vmatprep.subr.mxu0 0.0
        %1450 = vmatpush2.msra.mxu0 0.0
        %1451 = vmatprep.subr.mxu0 0.0
        %1452 = vmatpush2.msra.mxu0 0.0
        %1453 = vmatprep.subr.mxu0 0.0
        %1454 = vmatpush2.msra.mxu0 0.0
        %1455 = vmatprep.subr.mxu0 0.0
        %1456 = vmatpush2.msra.mxu0 0.0
        %1457 = vmatprep.subr.mxu0 0.0
        %1458 = vmatpush2.msra.mxu0 0.0
        %1459 = vmatprep.subr.mxu0 0.0
        %1460 = vmatpush2.msra.mxu0 0.0
        %1461 = vmatprep.subr.mxu0 0.0
        %1462 = vmatpush2.msra.mxu0 0.0
        %1463 = vmatprep.subr.mxu0 0.0
        %1464 = vmatpush2.msra.mxu0 0.0
        %1465 = vmatprep.subr.mxu0 0.0
        %1466 = vmatpush2.msra.mxu0 0.0
        %1467 = vmatprep.subr.mxu0 0.0
        %1468 = vmatpush2.msra.mxu0 0.0
        %1469 = vmatprep.subr.mxu0 0.0
        %1470 = vmatpush2.msra.mxu0 0.0
        %1471 = vmatprep.subr.mxu0 0.0
        %1472 = vmatpush2.msra.mxu0 0.0
        %1473 = vmatprep.subr.mxu0 0.0
        %1474 = vmatpush2.msra.mxu0 0.0
        %1475 = vmatprep.subr.mxu0 0.0
        %1476 = vmatpush2.msra.mxu0 0.0
        %1477 = vmatprep.subr.mxu0 0.0
        %1478 = vmatpush2.msra.mxu0 0.0
        %1479 = vmatprep.subr.mxu0 0.0
        %1480 = vmatpush2.msra.mxu0 0.0
        %1481 = vmatprep.mubr.f32.mxu0 0.0
        %1482 = vmatmul.mubr.f32.gmra.mxu0 %v1374
        %v1483 = vpop.f32.mrf.mxu0
        %v1484 = vadd.f32 %v712, %v1483
        %v1485 = vpop.f32.mrf.mxu0
        %v1486 = vadd.f32 %v714, %v1485
        %1487 = vmatprep.mubr.f32.mxu0 0.0
        %1488 = vmatmul.mubr.f32.gmra.mxu0 %v1377
        %v1489 = vpop.f32.mrf.mxu0
        %v1490 = vadd.f32 %v718, %v1489
        %v1491 = vpop.f32.mrf.mxu0
        %v1492 = vadd.f32 %v720, %v1491
        %1493 = vmatprep.mubr.f32.mxu0 0.0
        %1494 = vmatmul.mubr.f32.gmra.mxu0 %v1380
        %v1495 = vpop.f32.mrf.mxu0
        %v1496 = vadd.f32 %v724, %v1495
        %v1497 = vpop.f32.mrf.mxu0
        %v1498 = vadd.f32 %v726, %v1497
        %1499 = vmatprep.mubr.f32.mxu0 0.0
        %1500 = vmatmul.mubr.f32.gmra.mxu0 %v1383
        %v1501 = vpop.f32.mrf.mxu0
        %v1502 = vadd.f32 %v730, %v1501
        %v1503 = vpop.f32.mrf.mxu0
        %v1504 = vadd.f32 %v732, %v1503
        %1505 = vdwg.mxu0
        %1506 = vmatprep.subr.mxu0 0.0
        %1507 = vmatpush1.msra.mxu0 0.0
        %1508 = vmatprep.subr.mxu0 0.0
        %1509 = vmatpush1.msra.mxu0 0.0
        %1510 = vmatprep.subr.mxu0 0.0
        %1511 = vmatpush1.msra.mxu0 0.0
        %1512 = vmatprep.subr.mxu0 0.0
        %1513 = vmatpush1.msra.mxu0 0.0
        %1514 = vmatprep.subr.mxu0 0.0
        %1515 = vmatpush1.msra.mxu0 0.0
        %1516 = vmatprep.subr.mxu0 0.0
        %1517 = vmatpush1.msra.mxu0 0.0
        %1518 = vmatprep.subr.mxu0 0.0
        %1519 = vmatpush1.msra.mxu0 0.0
        %1520 = vmatprep.subr.mxu0 0.0
        %1521 = vmatpush1.msra.mxu0 0.0
        %1522 = vmatprep.subr.mxu0 0.0
        %1523 = vmatpush1.msra.mxu0 0.0
        %1524 = vmatprep.subr.mxu0 0.0
        %1525 = vmatpush1.msra.mxu0 0.0
        %1526 = vmatprep.subr.mxu0 0.0
        %1527 = vmatpush1.msra.mxu0 0.0
        %1528 = vmatprep.subr.mxu0 0.0
        %1529 = vmatpush1.msra.mxu0 0.0
        %1530 = vmatprep.subr.mxu0 0.0
        %1531 = vmatpush1.msra.mxu0 0.0
        %1532 = vmatprep.subr.mxu0 0.0
        %1533 = vmatpush1.msra.mxu0 0.0
        %1534 = vmatprep.subr.mxu0 0.0
        %1535 = vmatpush1.msra.mxu0 0.0
        %1536 = vmatprep.subr.mxu0 %v1391
        %1537 = vmatpush1.msra.mxu0 %v1389
        %1538 = vmatprep.subr.mxu0 0.0
        %1539 = vmatpush2.msra.mxu0 0.0
        %1540 = vmatprep.subr.mxu0 0.0
        %1541 = vmatpush2.msra.mxu0 0.0
        %1542 = vmatprep.subr.mxu0 0.0
        %1543 = vmatpush2.msra.mxu0 0.0
        %1544 = vmatprep.subr.mxu0 0.0
        %1545 = vmatpush2.msra.mxu0 0.0
        %1546 = vmatprep.subr.mxu0 0.0
        %1547 = vmatpush2.msra.mxu0 0.0
        %1548 = vmatprep.subr.mxu0 0.0
        %1549 = vmatpush2.msra.mxu0 0.0
        %1550 = vmatprep.subr.mxu0 0.0
        %1551 = vmatpush2.msra.mxu0 0.0
        %1552 = vmatprep.subr.mxu0 0.0
        %1553 = vmatpush2.msra.mxu0 0.0
        %1554 = vmatprep.subr.mxu0 0.0
        %1555 = vmatpush2.msra.mxu0 0.0
        %1556 = vmatprep.subr.mxu0 0.0
        %1557 = vmatpush2.msra.mxu0 0.0
        %1558 = vmatprep.subr.mxu0 0.0
        %1559 = vmatpush2.msra.mxu0 0.0
        %1560 = vmatprep.subr.mxu0 0.0
        %1561 = vmatpush2.msra.mxu0 0.0
        %1562 = vmatprep.subr.mxu0 0.0
        %1563 = vmatpush2.msra.mxu0 0.0
        %1564 = vmatprep.subr.mxu0 0.0
        %1565 = vmatpush2.msra.mxu0 0.0
        %1566 = vmatprep.subr.mxu0 0.0
        %1567 = vmatpush2.msra.mxu0 0.0
        %1568 = vmatprep.subr.mxu0 0.0
        %1569 = vmatpush2.msra.mxu0 0.0
        %1570 = vmatprep.mubr.f32.mxu0 0.0
        %1571 = vmatmul.mubr.f32.gmra.mxu0 %v1374
        %v1572 = vpop.f32.mrf.mxu0
        %v1573 = vadd.f32 %v801, %v1572
        %v1574 = vpop.f32.mrf.mxu0
        %v1575 = vadd.f32 %v803, %v1574
        %1576 = vmatprep.mubr.f32.mxu0 0.0
        %1577 = vmatmul.mubr.f32.gmra.mxu0 %v1377
        %v1578 = vpop.f32.mrf.mxu0
        %v1579 = vadd.f32 %v807, %v1578
        %v1580 = vpop.f32.mrf.mxu0
        %v1581 = vadd.f32 %v809, %v1580
        %1582 = vmatprep.mubr.f32.mxu0 0.0
        %1583 = vmatmul.mubr.f32.gmra.mxu0 %v1380
        %v1584 = vpop.f32.mrf.mxu0
        %v1585 = vadd.f32 %v813, %v1584
        %v1586 = vpop.f32.mrf.mxu0
        %v1587 = vadd.f32 %v815, %v1586
        %1588 = vmatprep.mubr.f32.mxu0 0.0
        %1589 = vmatmul.mubr.f32.gmra.mxu0 %v1383
        %v1590 = vpop.f32.mrf.mxu0
        %v1591 = vadd.f32 %v819, %v1590
        %v1592 = vpop.f32.mrf.mxu0
        %v1593 = vadd.f32 %v821, %v1592
        %1594 = vdwg.mxu0
        %1595 = vmatprep.subr.mxu0 0.0
        %1596 = vmatpush1.msra.mxu0 0.0
        %1597 = vmatprep.subr.mxu0 0.0
        %1598 = vmatpush1.msra.mxu0 0.0
        %1599 = vmatprep.subr.mxu0 0.0
        %1600 = vmatpush1.msra.mxu0 0.0
        %1601 = vmatprep.subr.mxu0 0.0
        %1602 = vmatpush1.msra.mxu0 0.0
        %1603 = vmatprep.subr.mxu0 0.0
        %1604 = vmatpush1.msra.mxu0 0.0
        %1605 = vmatprep.subr.mxu0 0.0
        %1606 = vmatpush1.msra.mxu0 0.0
        %1607 = vmatprep.subr.mxu0 0.0
        %1608 = vmatpush1.msra.mxu0 0.0
        %1609 = vmatprep.subr.mxu0 0.0
        %1610 = vmatpush1.msra.mxu0 0.0
        %1611 = vmatprep.subr.mxu0 0.0
        %1612 = vmatpush1.msra.mxu0 0.0
        %1613 = vmatprep.subr.mxu0 0.0
        %1614 = vmatpush1.msra.mxu0 0.0
        %1615 = vmatprep.subr.mxu0 0.0
        %1616 = vmatpush1.msra.mxu0 0.0
        %1617 = vmatprep.subr.mxu0 0.0
        %1618 = vmatpush1.msra.mxu0 0.0
        %1619 = vmatprep.subr.mxu0 0.0
        %1620 = vmatpush1.msra.mxu0 0.0
        %1621 = vmatprep.subr.mxu0 0.0
        %1622 = vmatpush1.msra.mxu0 0.0
        %1623 = vmatprep.subr.mxu0 0.0
        %1624 = vmatpush1.msra.mxu0 0.0
        %1625 = vmatprep.subr.mxu0 %v1395
        %1626 = vmatpush1.msra.mxu0 %v1393
        %1627 = vmatprep.subr.mxu0 0.0
        %1628 = vmatpush2.msra.mxu0 0.0
        %1629 = vmatprep.subr.mxu0 0.0
        %1630 = vmatpush2.msra.mxu0 0.0
        %1631 = vmatprep.subr.mxu0 0.0
        %1632 = vmatpush2.msra.mxu0 0.0
        %1633 = vmatprep.subr.mxu0 0.0
        %1634 = vmatpush2.msra.mxu0 0.0
        %1635 = vmatprep.subr.mxu0 0.0
        %1636 = vmatpush2.msra.mxu0 0.0
        %1637 = vmatprep.subr.mxu0 0.0
        %1638 = vmatpush2.msra.mxu0 0.0
        %1639 = vmatprep.subr.mxu0 0.0
        %1640 = vmatpush2.msra.mxu0 0.0
        %1641 = vmatprep.subr.mxu0 0.0
        %1642 = vmatpush2.msra.mxu0 0.0
        %1643 = vmatprep.subr.mxu0 0.0
        %1644 = vmatpush2.msra.mxu0 0.0
        %1645 = vmatprep.subr.mxu0 0.0
        %1646 = vmatpush2.msra.mxu0 0.0
        %1647 = vmatprep.subr.mxu0 0.0
        %1648 = vmatpush2.msra.mxu0 0.0
        %1649 = vmatprep.subr.mxu0 0.0
        %1650 = vmatpush2.msra.mxu0 0.0
        %1651 = vmatprep.subr.mxu0 0.0
        %1652 = vmatpush2.msra.mxu0 0.0
        %1653 = vmatprep.subr.mxu0 0.0
        %1654 = vmatpush2.msra.mxu0 0.0
        %1655 = vmatprep.subr.mxu0 0.0
        %1656 = vmatpush2.msra.mxu0 0.0
        %1657 = vmatprep.subr.mxu0 0.0
        %1658 = vmatpush2.msra.mxu0 0.0
        %1659 = vmatprep.mubr.f32.mxu0 0.0
        %1660 = vmatmul.mubr.f32.gmra.mxu0 %v1374
        %v1661 = vpop.f32.mrf.mxu0
        %v1662 = vadd.f32 %v890, %v1661
        %v1663 = vpop.f32.mrf.mxu0
        %v1664 = vadd.f32 %v892, %v1663
        %1665 = vmatprep.mubr.f32.mxu0 0.0
        %1666 = vmatmul.mubr.f32.gmra.mxu0 %v1377
        %v1667 = vpop.f32.mrf.mxu0
        %v1668 = vadd.f32 %v896, %v1667
        %v1669 = vpop.f32.mrf.mxu0
        %v1670 = vadd.f32 %v898, %v1669
        %1671 = vmatprep.mubr.f32.mxu0 0.0
        %1672 = vmatmul.mubr.f32.gmra.mxu0 %v1380
        %v1673 = vpop.f32.mrf.mxu0
        %v1674 = vadd.f32 %v902, %v1673
        %v1675 = vpop.f32.mrf.mxu0
        %v1676 = vadd.f32 %v904, %v1675
        %1677 = vmatprep.mubr.f32.mxu0 0.0
        %1678 = vmatmul.mubr.f32.gmra.mxu0 %v1383
        %v1679 = vpop.f32.mrf.mxu0
        %v1680 = vadd.f32 %v908, %v1679
        %v1681 = vpop.f32.mrf.mxu0
        %v1682 = vadd.f32 %v910, %v1681
        %1683 = vdwg.mxu0
        %1684 = vmatprep.subr.mxu0 0.0
        %1685 = vmatpush1.msra.mxu0 0.0
        %1686 = vmatprep.subr.mxu0 0.0
        %1687 = vmatpush1.msra.mxu0 0.0
        %1688 = vmatprep.subr.mxu0 0.0
        %1689 = vmatpush1.msra.mxu0 0.0
        %1690 = vmatprep.subr.mxu0 0.0
        %1691 = vmatpush1.msra.mxu0 0.0
        %1692 = vmatprep.subr.mxu0 0.0
        %1693 = vmatpush1.msra.mxu0 0.0
        %1694 = vmatprep.subr.mxu0 0.0
        %1695 = vmatpush1.msra.mxu0 0.0
        %1696 = vmatprep.subr.mxu0 0.0
        %1697 = vmatpush1.msra.mxu0 0.0
        %1698 = vmatprep.subr.mxu0 0.0
        %1699 = vmatpush1.msra.mxu0 0.0
        %1700 = vmatprep.subr.mxu0 0.0
        %1701 = vmatpush1.msra.mxu0 0.0
        %1702 = vmatprep.subr.mxu0 0.0
        %1703 = vmatpush1.msra.mxu0 0.0
        %1704 = vmatprep.subr.mxu0 0.0
        %1705 = vmatpush1.msra.mxu0 0.0
        %1706 = vmatprep.subr.mxu0 0.0
        %1707 = vmatpush1.msra.mxu0 0.0
        %1708 = vmatprep.subr.mxu0 0.0
        %1709 = vmatpush1.msra.mxu0 0.0
        %1710 = vmatprep.subr.mxu0 0.0
        %1711 = vmatpush1.msra.mxu0 0.0
        %1712 = vmatprep.subr.mxu0 0.0
        %1713 = vmatpush1.msra.mxu0 0.0
        %1714 = vmatprep.subr.mxu0 %v1399
        %1715 = vmatpush1.msra.mxu0 %v1397
        %1716 = vmatprep.subr.mxu0 0.0
        %1717 = vmatpush2.msra.mxu0 0.0
        %1718 = vmatprep.subr.mxu0 0.0
        %1719 = vmatpush2.msra.mxu0 0.0
        %1720 = vmatprep.subr.mxu0 0.0
        %1721 = vmatpush2.msra.mxu0 0.0
        %1722 = vmatprep.subr.mxu0 0.0
        %1723 = vmatpush2.msra.mxu0 0.0
        %1724 = vmatprep.subr.mxu0 0.0
        %1725 = vmatpush2.msra.mxu0 0.0
        %1726 = vmatprep.subr.mxu0 0.0
        %1727 = vmatpush2.msra.mxu0 0.0
        %1728 = vmatprep.subr.mxu0 0.0
        %1729 = vmatpush2.msra.mxu0 0.0
        %1730 = vmatprep.subr.mxu0 0.0
        %1731 = vmatpush2.msra.mxu0 0.0
        %1732 = vmatprep.subr.mxu0 0.0
        %1733 = vmatpush2.msra.mxu0 0.0
        %1734 = vmatprep.subr.mxu0 0.0
        %1735 = vmatpush2.msra.mxu0 0.0
        %1736 = vmatprep.subr.mxu0 0.0
        %1737 = vmatpush2.msra.mxu0 0.0
        %1738 = vmatprep.subr.mxu0 0.0
        %1739 = vmatpush2.msra.mxu0 0.0
        %1740 = vmatprep.subr.mxu0 0.0
        %1741 = vmatpush2.msra.mxu0 0.0
        %1742 = vmatprep.subr.mxu0 0.0
        %1743 = vmatpush2.msra.mxu0 0.0
        %1744 = vmatprep.subr.mxu0 0.0
        %1745 = vmatpush2.msra.mxu0 0.0
        %1746 = vmatprep.subr.mxu0 0.0
        %1747 = vmatpush2.msra.mxu0 0.0
        %1748 = vmatprep.mubr.f32.mxu0 0.0
        %1749 = vmatmul.mubr.f32.gmra.mxu0 %v1374
        %v1750 = vpop.f32.mrf.mxu0
        %v1751 = vadd.f32 %v979, %v1750
        %v1752 = vpop.f32.mrf.mxu0
        %v1753 = vadd.f32 %v981, %v1752
        %1754 = vmatprep.mubr.f32.mxu0 0.0
        %1755 = vmatmul.mubr.f32.gmra.mxu0 %v1377
        %v1756 = vpop.f32.mrf.mxu0
        %v1757 = vadd.f32 %v985, %v1756
        %v1758 = vpop.f32.mrf.mxu0
        %v1759 = vadd.f32 %v987, %v1758
        %1760 = vmatprep.mubr.f32.mxu0 0.0
        %1761 = vmatmul.mubr.f32.gmra.mxu0 %v1380
        %v1762 = vpop.f32.mrf.mxu0
        %v1763 = vadd.f32 %v991, %v1762
        %v1764 = vpop.f32.mrf.mxu0
        %v1765 = vadd.f32 %v993, %v1764
        %1766 = vmatprep.mubr.f32.mxu0 0.0
        %1767 = vmatmul.mubr.f32.gmra.mxu0 %v1383
        %v1768 = vpop.f32.mrf.mxu0
        %v1769 = vadd.f32 %v997, %v1768
        %v1770 = vpop.f32.mrf.mxu0
        %v1771 = vadd.f32 %v999, %v1770
        %1772 = vdwg.mxu0
        %1773 = vmatprep.subr.mxu0 0.0
        %1774 = vmatpush1.msra.mxu0 0.0
        %1775 = vmatprep.subr.mxu0 0.0
        %1776 = vmatpush1.msra.mxu0 0.0
        %1777 = vmatprep.subr.mxu0 0.0
        %1778 = vmatpush1.msra.mxu0 0.0
        %1779 = vmatprep.subr.mxu0 0.0
        %1780 = vmatpush1.msra.mxu0 0.0
        %1781 = vmatprep.subr.mxu0 0.0
        %1782 = vmatpush1.msra.mxu0 0.0
        %1783 = vmatprep.subr.mxu0 0.0
        %1784 = vmatpush1.msra.mxu0 0.0
        %1785 = vmatprep.subr.mxu0 0.0
        %1786 = vmatpush1.msra.mxu0 0.0
        %1787 = vmatprep.subr.mxu0 0.0
        %1788 = vmatpush1.msra.mxu0 0.0
        %1789 = vmatprep.subr.mxu0 0.0
        %1790 = vmatpush1.msra.mxu0 0.0
        %1791 = vmatprep.subr.mxu0 0.0
        %1792 = vmatpush1.msra.mxu0 0.0
        %1793 = vmatprep.subr.mxu0 0.0
        %1794 = vmatpush1.msra.mxu0 0.0
        %1795 = vmatprep.subr.mxu0 0.0
        %1796 = vmatpush1.msra.mxu0 0.0
        %1797 = vmatprep.subr.mxu0 0.0
        %1798 = vmatpush1.msra.mxu0 0.0
        %1799 = vmatprep.subr.mxu0 0.0
        %1800 = vmatpush1.msra.mxu0 0.0
        %1801 = vmatprep.subr.mxu0 0.0
        %1802 = vmatpush1.msra.mxu0 0.0
        %1803 = vmatprep.subr.mxu0 %v1403
        %1804 = vmatpush1.msra.mxu0 %v1401
        %1805 = vmatprep.subr.mxu0 0.0
        %1806 = vmatpush2.msra.mxu0 0.0
        %1807 = vmatprep.subr.mxu0 0.0
        %1808 = vmatpush2.msra.mxu0 0.0
        %1809 = vmatprep.subr.mxu0 0.0
        %1810 = vmatpush2.msra.mxu0 0.0
        %1811 = vmatprep.subr.mxu0 0.0
        %1812 = vmatpush2.msra.mxu0 0.0
        %1813 = vmatprep.subr.mxu0 0.0
        %1814 = vmatpush2.msra.mxu0 0.0
        %1815 = vmatprep.subr.mxu0 0.0
        %1816 = vmatpush2.msra.mxu0 0.0
        %1817 = vmatprep.subr.mxu0 0.0
        %1818 = vmatpush2.msra.mxu0 0.0
        %1819 = vmatprep.subr.mxu0 0.0
        %1820 = vmatpush2.msra.mxu0 0.0
        %1821 = vmatprep.subr.mxu0 0.0
        %1822 = vmatpush2.msra.mxu0 0.0
        %1823 = vmatprep.subr.mxu0 0.0
        %1824 = vmatpush2.msra.mxu0 0.0
        %1825 = vmatprep.subr.mxu0 0.0
        %1826 = vmatpush2.msra.mxu0 0.0
        %1827 = vmatprep.subr.mxu0 0.0
        %1828 = vmatpush2.msra.mxu0 0.0
        %1829 = vmatprep.subr.mxu0 0.0
        %1830 = vmatpush2.msra.mxu0 0.0
        %1831 = vmatprep.subr.mxu0 0.0
        %1832 = vmatpush2.msra.mxu0 0.0
        %1833 = vmatprep.subr.mxu0 0.0
        %1834 = vmatpush2.msra.mxu0 0.0
        %1835 = vmatprep.subr.mxu0 0.0
        %1836 = vmatpush2.msra.mxu0 0.0
        %1837 = vmatprep.mubr.f32.mxu0 0.0
        %1838 = vmatmul.mubr.f32.gmra.mxu0 %v1374
        %v1839 = vpop.f32.mrf.mxu0
        %v1840 = vadd.f32 %v1068, %v1839
        %v1841 = vpop.f32.mrf.mxu0
        %v1842 = vadd.f32 %v1070, %v1841
        %1843 = vmatprep.mubr.f32.mxu0 0.0
        %1844 = vmatmul.mubr.f32.gmra.mxu0 %v1377
        %v1845 = vpop.f32.mrf.mxu0
        %v1846 = vadd.f32 %v1074, %v1845
        %v1847 = vpop.f32.mrf.mxu0
        %v1848 = vadd.f32 %v1076, %v1847
        %1849 = vmatprep.mubr.f32.mxu0 0.0
        %1850 = vmatmul.mubr.f32.gmra.mxu0 %v1380
        %v1851 = vpop.f32.mrf.mxu0
        %v1852 = vadd.f32 %v1080, %v1851
        %v1853 = vpop.f32.mrf.mxu0
        %v1854 = vadd.f32 %v1082, %v1853
        %1855 = vmatprep.mubr.f32.mxu0 0.0
        %1856 = vmatmul.mubr.f32.gmra.mxu0 %v1383
        %v1857 = vpop.f32.mrf.mxu0
        %v1858 = vadd.f32 %v1086, %v1857
        %v1859 = vpop.f32.mrf.mxu0
        %v1860 = vadd.f32 %v1088, %v1859
        %1861 = vdwg.mxu0
        %1862 = vmatprep.subr.mxu0 0.0
        %1863 = vmatpush1.msra.mxu0 0.0
        %1864 = vmatprep.subr.mxu0 0.0
        %1865 = vmatpush1.msra.mxu0 0.0
        %1866 = vmatprep.subr.mxu0 0.0
        %1867 = vmatpush1.msra.mxu0 0.0
        %1868 = vmatprep.subr.mxu0 0.0
        %1869 = vmatpush1.msra.mxu0 0.0
        %1870 = vmatprep.subr.mxu0 0.0
        %1871 = vmatpush1.msra.mxu0 0.0
        %1872 = vmatprep.subr.mxu0 0.0
        %1873 = vmatpush1.msra.mxu0 0.0
        %1874 = vmatprep.subr.mxu0 0.0
        %1875 = vmatpush1.msra.mxu0 0.0
        %1876 = vmatprep.subr.mxu0 0.0
        %1877 = vmatpush1.msra.mxu0 0.0
        %1878 = vmatprep.subr.mxu0 0.0
        %1879 = vmatpush1.msra.mxu0 0.0
        %1880 = vmatprep.subr.mxu0 0.0
        %1881 = vmatpush1.msra.mxu0 0.0
        %1882 = vmatprep.subr.mxu0 0.0
        %1883 = vmatpush1.msra.mxu0 0.0
        %1884 = vmatprep.subr.mxu0 0.0
        %1885 = vmatpush1.msra.mxu0 0.0
        %1886 = vmatprep.subr.mxu0 0.0
        %1887 = vmatpush1.msra.mxu0 0.0
        %1888 = vmatprep.subr.mxu0 0.0
        %1889 = vmatpush1.msra.mxu0 0.0
        %1890 = vmatprep.subr.mxu0 0.0
        %1891 = vmatpush1.msra.mxu0 0.0
        %1892 = vmatprep.subr.mxu0 %v1407
        %1893 = vmatpush1.msra.mxu0 %v1405
        %1894 = vmatprep.subr.mxu0 0.0
        %1895 = vmatpush2.msra.mxu0 0.0
        %1896 = vmatprep.subr.mxu0 0.0
        %1897 = vmatpush2.msra.mxu0 0.0
        %1898 = vmatprep.subr.mxu0 0.0
        %1899 = vmatpush2.msra.mxu0 0.0
        %1900 = vmatprep.subr.mxu0 0.0
        %1901 = vmatpush2.msra.mxu0 0.0
        %1902 = vmatprep.subr.mxu0 0.0
        %1903 = vmatpush2.msra.mxu0 0.0
        %1904 = vmatprep.subr.mxu0 0.0
        %1905 = vmatpush2.msra.mxu0 0.0
        %1906 = vmatprep.subr.mxu0 0.0
        %1907 = vmatpush2.msra.mxu0 0.0
        %1908 = vmatprep.subr.mxu0 0.0
        %1909 = vmatpush2.msra.mxu0 0.0
        %1910 = vmatprep.subr.mxu0 0.0
        %1911 = vmatpush2.msra.mxu0 0.0
        %1912 = vmatprep.subr.mxu0 0.0
        %1913 = vmatpush2.msra.mxu0 0.0
        %1914 = vmatprep.subr.mxu0 0.0
        %1915 = vmatpush2.msra.mxu0 0.0
        %1916 = vmatprep.subr.mxu0 0.0
        %1917 = vmatpush2.msra.mxu0 0.0
        %1918 = vmatprep.subr.mxu0 0.0
        %1919 = vmatpush2.msra.mxu0 0.0
        %1920 = vmatprep.subr.mxu0 0.0
        %1921 = vmatpush2.msra.mxu0 0.0
        %1922 = vmatprep.subr.mxu0 0.0
        %1923 = vmatpush2.msra.mxu0 0.0
        %1924 = vmatprep.subr.mxu0 0.0
        %1925 = vmatpush2.msra.mxu0 0.0
        %1926 = vmatprep.mubr.f32.mxu0 0.0
        %1927 = vmatmul.mubr.f32.gmra.mxu0 %v1374
        %v1928 = vpop.f32.mrf.mxu0
        %v1929 = vadd.f32 %v1157, %v1928
        %v1930 = vpop.f32.mrf.mxu0
        %v1931 = vadd.f32 %v1159, %v1930
        %1932 = vmatprep.mubr.f32.mxu0 0.0
        %1933 = vmatmul.mubr.f32.gmra.mxu0 %v1377
        %v1934 = vpop.f32.mrf.mxu0
        %v1935 = vadd.f32 %v1163, %v1934
        %v1936 = vpop.f32.mrf.mxu0
        %v1937 = vadd.f32 %v1165, %v1936
        %1938 = vmatprep.mubr.f32.mxu0 0.0
        %1939 = vmatmul.mubr.f32.gmra.mxu0 %v1380
        %v1940 = vpop.f32.mrf.mxu0
        %v1941 = vadd.f32 %v1169, %v1940
        %v1942 = vpop.f32.mrf.mxu0
        %v1943 = vadd.f32 %v1171, %v1942
        %1944 = vmatprep.mubr.f32.mxu0 0.0
        %1945 = vmatmul.mubr.f32.gmra.mxu0 %v1383
        %v1946 = vpop.f32.mrf.mxu0
        %v1947 = vadd.f32 %v1175, %v1946
        %v1948 = vpop.f32.mrf.mxu0
        %v1949 = vadd.f32 %v1177, %v1948
        %1950 = vdwg.mxu0
        %1951 = vmatprep.subr.mxu0 0.0
        %1952 = vmatpush1.msra.mxu0 0.0
        %1953 = vmatprep.subr.mxu0 0.0
        %1954 = vmatpush1.msra.mxu0 0.0
        %1955 = vmatprep.subr.mxu0 0.0
        %1956 = vmatpush1.msra.mxu0 0.0
        %1957 = vmatprep.subr.mxu0 0.0
        %1958 = vmatpush1.msra.mxu0 0.0
        %1959 = vmatprep.subr.mxu0 0.0
        %1960 = vmatpush1.msra.mxu0 0.0
        %1961 = vmatprep.subr.mxu0 0.0
        %1962 = vmatpush1.msra.mxu0 0.0
        %1963 = vmatprep.subr.mxu0 0.0
        %1964 = vmatpush1.msra.mxu0 0.0
        %1965 = vmatprep.subr.mxu0 0.0
        %1966 = vmatpush1.msra.mxu0 0.0
        %1967 = vmatprep.subr.mxu0 0.0
        %1968 = vmatpush1.msra.mxu0 0.0
        %1969 = vmatprep.subr.mxu0 0.0
        %1970 = vmatpush1.msra.mxu0 0.0
        %1971 = vmatprep.subr.mxu0 0.0
        %1972 = vmatpush1.msra.mxu0 0.0
        %1973 = vmatprep.subr.mxu0 0.0
        %1974 = vmatpush1.msra.mxu0 0.0
        %1975 = vmatprep.subr.mxu0 0.0
        %1976 = vmatpush1.msra.mxu0 0.0
        %1977 = vmatprep.subr.mxu0 0.0
        %1978 = vmatpush1.msra.mxu0 0.0
        %1979 = vmatprep.subr.mxu0 0.0
        %1980 = vmatpush1.msra.mxu0 0.0
        %1981 = vmatprep.subr.mxu0 %v1411
        %1982 = vmatpush1.msra.mxu0 %v1409
        %1983 = vmatprep.subr.mxu0 0.0
        %1984 = vmatpush2.msra.mxu0 0.0
        %1985 = vmatprep.subr.mxu0 0.0
        %1986 = vmatpush2.msra.mxu0 0.0
        %1987 = vmatprep.subr.mxu0 0.0
        %1988 = vmatpush2.msra.mxu0 0.0
        %1989 = vmatprep.subr.mxu0 0.0
        %1990 = vmatpush2.msra.mxu0 0.0
        %1991 = vmatprep.subr.mxu0 0.0
        %1992 = vmatpush2.msra.mxu0 0.0
        %1993 = vmatprep.subr.mxu0 0.0
        %1994 = vmatpush2.msra.mxu0 0.0
        %1995 = vmatprep.subr.mxu0 0.0
        %1996 = vmatpush2.msra.mxu0 0.0
        %1997 = vmatprep.subr.mxu0 0.0
        %1998 = vmatpush2.msra.mxu0 0.0
        %1999 = vmatprep.subr.mxu0 0.0
        %2000 = vmatpush2.msra.mxu0 0.0
        %2001 = vmatprep.subr.mxu0 0.0
        %2002 = vmatpush2.msra.mxu0 0.0
        %2003 = vmatprep.subr.mxu0 0.0
        %2004 = vmatpush2.msra.mxu0 0.0
        %2005 = vmatprep.subr.mxu0 0.0
        %2006 = vmatpush2.msra.mxu0 0.0
        %2007 = vmatprep.subr.mxu0 0.0
        %2008 = vmatpush2.msra.mxu0 0.0
        %2009 = vmatprep.subr.mxu0 0.0
        %2010 = vmatpush2.msra.mxu0 0.0
        %2011 = vmatprep.subr.mxu0 0.0
        %2012 = vmatpush2.msra.mxu0 0.0
        %2013 = vmatprep.subr.mxu0 0.0
        %2014 = vmatpush2.msra.mxu0 0.0
        %2015 = vmatprep.mubr.f32.mxu0 0.0
        %2016 = vmatmul.mubr.f32.gmra.mxu0 %v1374
        %v2017 = vpop.f32.mrf.mxu0
        %v2018 = vadd.f32 %v1246, %v2017
        %v2019 = vpop.f32.mrf.mxu0
        %v2020 = vadd.f32 %v1248, %v2019
        %2021 = vmatprep.mubr.f32.mxu0 0.0
        %2022 = vmatmul.mubr.f32.gmra.mxu0 %v1377
        %v2023 = vpop.f32.mrf.mxu0
        %v2024 = vadd.f32 %v1252, %v2023
        %v2025 = vpop.f32.mrf.mxu0
        %v2026 = vadd.f32 %v1254, %v2025
        %2027 = vmatprep.mubr.f32.mxu0 0.0
        %2028 = vmatmul.mubr.f32.gmra.mxu0 %v1380
        %v2029 = vpop.f32.mrf.mxu0
        %v2030 = vadd.f32 %v1258, %v2029
        %v2031 = vpop.f32.mrf.mxu0
        %v2032 = vadd.f32 %v1260, %v2031
        %2033 = vmatprep.mubr.f32.mxu0 0.0
        %2034 = vmatmul.mubr.f32.gmra.mxu0 %v1383
        %v2035 = vpop.f32.mrf.mxu0
        %v2036 = vadd.f32 %v1264, %v2035
        %v2037 = vpop.f32.mrf.mxu0
        %v2038 = vadd.f32 %v1266, %v2037
        %2039 = vdwg.mxu0
        %2040 = vmatprep.subr.mxu0 0.0
        %2041 = vmatpush1.msra.mxu0 0.0
        %2042 = vmatprep.subr.mxu0 0.0
        %2043 = vmatpush1.msra.mxu0 0.0
        %2044 = vmatprep.subr.mxu0 0.0
        %2045 = vmatpush1.msra.mxu0 0.0
        %2046 = vmatprep.subr.mxu0 0.0
        %2047 = vmatpush1.msra.mxu0 0.0
        %2048 = vmatprep.subr.mxu0 0.0
        %2049 = vmatpush1.msra.mxu0 0.0
        %2050 = vmatprep.subr.mxu0 0.0
        %2051 = vmatpush1.msra.mxu0 0.0
        %2052 = vmatprep.subr.mxu0 0.0
        %2053 = vmatpush1.msra.mxu0 0.0
        %2054 = vmatprep.subr.mxu0 0.0
        %2055 = vmatpush1.msra.mxu0 0.0
        %2056 = vmatprep.subr.mxu0 0.0
        %2057 = vmatpush1.msra.mxu0 0.0
        %2058 = vmatprep.subr.mxu0 0.0
        %2059 = vmatpush1.msra.mxu0 0.0
        %2060 = vmatprep.subr.mxu0 0.0
        %2061 = vmatpush1.msra.mxu0 0.0
        %2062 = vmatprep.subr.mxu0 0.0
        %2063 = vmatpush1.msra.mxu0 0.0
        %2064 = vmatprep.subr.mxu0 0.0
        %2065 = vmatpush1.msra.mxu0 0.0
        %2066 = vmatprep.subr.mxu0 0.0
        %2067 = vmatpush1.msra.mxu0 0.0
        %2068 = vmatprep.subr.mxu0 0.0
        %2069 = vmatpush1.msra.mxu0 0.0
        %2070 = vmatprep.subr.mxu0 %v1415
        %2071 = vmatpush1.msra.mxu0 %v1413
        %2072 = vmatprep.subr.mxu0 0.0
        %2073 = vmatpush2.msra.mxu0 0.0
        %2074 = vmatprep.subr.mxu0 0.0
        %2075 = vmatpush2.msra.mxu0 0.0
        %2076 = vmatprep.subr.mxu0 0.0
        %2077 = vmatpush2.msra.mxu0 0.0
        %2078 = vmatprep.subr.mxu0 0.0
        %2079 = vmatpush2.msra.mxu0 0.0
        %2080 = vmatprep.subr.mxu0 0.0
        %2081 = vmatpush2.msra.mxu0 0.0
        %2082 = vmatprep.subr.mxu0 0.0
        %2083 = vmatpush2.msra.mxu0 0.0
        %2084 = vmatprep.subr.mxu0 0.0
        %2085 = vmatpush2.msra.mxu0 0.0
        %2086 = vmatprep.subr.mxu0 0.0
        %2087 = vmatpush2.msra.mxu0 0.0
        %2088 = vmatprep.subr.mxu0 0.0
        %2089 = vmatpush2.msra.mxu0 0.0
        %2090 = vmatprep.subr.mxu0 0.0
        %2091 = vmatpush2.msra.mxu0 0.0
        %2092 = vmatprep.subr.mxu0 0.0
        %2093 = vmatpush2.msra.mxu0 0.0
        %2094 = vmatprep.subr.mxu0 0.0
        %2095 = vmatpush2.msra.mxu0 0.0
        %2096 = vmatprep.subr.mxu0 0.0
        %2097 = vmatpush2.msra.mxu0 0.0
        %2098 = vmatprep.subr.mxu0 0.0
        %2099 = vmatpush2.msra.mxu0 0.0
        %2100 = vmatprep.subr.mxu0 0.0
        %2101 = vmatpush2.msra.mxu0 0.0
        %2102 = vmatprep.subr.mxu0 0.0
        %2103 = vmatpush2.msra.mxu0 0.0
        %2104 = vmatprep.mubr.f32.mxu0 0.0
        %2105 = vmatmul.mubr.f32.gmra.mxu0 %v1374
        %v2106 = vpop.f32.mrf.mxu0
        %v2107 = vadd.f32 %v1335, %v2106
        %v2108 = vpop.f32.mrf.mxu0
        %v2109 = vadd.f32 %v1337, %v2108
        %2110 = vmatprep.mubr.f32.mxu0 0.0
        %2111 = vmatmul.mubr.f32.gmra.mxu0 %v1377
        %v2112 = vpop.f32.mrf.mxu0
        %v2113 = vadd.f32 %v1341, %v2112
        %v2114 = vpop.f32.mrf.mxu0
        %v2115 = vadd.f32 %v1343, %v2114
        %2116 = vmatprep.mubr.f32.mxu0 0.0
        %2117 = vmatmul.mubr.f32.gmra.mxu0 %v1380
        %v2118 = vpop.f32.mrf.mxu0
        %v2119 = vadd.f32 %v1347, %v2118
        %v2120 = vpop.f32.mrf.mxu0
        %v2121 = vadd.f32 %v1349, %v2120
        %2122 = vmatprep.mubr.f32.mxu0 0.0
        %2123 = vmatmul.mubr.f32.gmra.mxu0 %v1383
        %v2124 = vpop.f32.mrf.mxu0
        %v2125 = vadd.f32 %v1353, %v2124
        %v2126 = vpop.f32.mrf.mxu0
        %v2127 = vadd.f32 %v1355, %v2126
        %2128 = vdwg.mxu0
        %v2129 = vld [vmem:[%s517] sm:$0xff]
        %v2130 = vld [vmem:[%s517 + $0x8] sm:$0xff]
        %v2131 = vld [vmem:[%s517 + $0x10] sm:$0xff]
        %v2132 = vld [vmem:[%s517 + $0x18] sm:$0xff]
        %2134 = vset.pattern.permute.xlu0 0
        %2135 = vperm.xlu0 %2134, %v2129
        %v2136 = vpop.permute.xlu0 %2135
        %2139 = vset.pattern.permute.xlu0 0
        %2140 = vperm.xlu0 %2139, %v2130
        %v2141 = vpop.permute.xlu0 %2140
        %2144 = vset.pattern.permute.xlu0 0
        %2145 = vperm.xlu0 %2144, %v2131
        %v2146 = vpop.permute.xlu0 %2145
        %2149 = vset.pattern.permute.xlu0 0
        %2150 = vperm.xlu0 %2149, %v2132
        %v2151 = vpop.permute.xlu0 %2150
        %v2153 = vadd.f32 %v1484, %v2136
        %v2154 = vadd.f32 %v1486, %v2136
        %v2155 = vadd.f32 %v1573, %v2136
        %v2156 = vadd.f32 %v1575, %v2136
        %v2157 = vadd.f32 %v1662, %v2136
        %v2158 = vadd.f32 %v1664, %v2136
        %v2159 = vadd.f32 %v1751, %v2136
        %v2160 = vadd.f32 %v1753, %v2136
        %v2161 = vadd.f32 %v1840, %v2136
        %v2162 = vadd.f32 %v1842, %v2136
        %v2163 = vadd.f32 %v1929, %v2136
        %v2164 = vadd.f32 %v1931, %v2136
        %v2165 = vadd.f32 %v2018, %v2136
        %v2166 = vadd.f32 %v2020, %v2136
        %v2167 = vadd.f32 %v2107, %v2136
        %v2168 = vadd.f32 %v2109, %v2136
        %v2169 = vadd.f32 %v1490, %v2141
        %v2170 = vadd.f32 %v1492, %v2141
        %v2171 = vadd.f32 %v1579, %v2141
        %v2172 = vadd.f32 %v1581, %v2141
        %v2173 = vadd.f32 %v1668, %v2141
        %v2174 = vadd.f32 %v1670, %v2141
        %v2175 = vadd.f32 %v1757, %v2141
        %v2176 = vadd.f32 %v1759, %v2141
        %v2177 = vadd.f32 %v1846, %v2141
        %v2178 = vadd.f32 %v1848, %v2141
        %v2179 = vadd.f32 %v1935, %v2141
        %v2180 = vadd.f32 %v1937, %v2141
        %v2181 = vadd.f32 %v2024, %v2141
        %v2182 = vadd.f32 %v2026, %v2141
        %v2183 = vadd.f32 %v2113, %v2141
        %v2184 = vadd.f32 %v2115, %v2141
        %v2185 = vadd.f32 %v1496, %v2146
        %v2186 = vadd.f32 %v1498, %v2146
        %v2187 = vadd.f32 %v1585, %v2146
        %v2188 = vadd.f32 %v1587, %v2146
        %v2189 = vadd.f32 %v1674, %v2146
        %v2190 = vadd.f32 %v1676, %v2146
        %v2191 = vadd.f32 %v1763, %v2146
        %v2192 = vadd.f32 %v1765, %v2146
        %v2193 = vadd.f32 %v1852, %v2146
        %v2194 = vadd.f32 %v1854, %v2146
        %v2195 = vadd.f32 %v1941, %v2146
        %v2196 = vadd.f32 %v1943, %v2146
        %v2197 = vadd.f32 %v2030, %v2146
        %v2198 = vadd.f32 %v2032, %v2146
        %v2199 = vadd.f32 %v2119, %v2146
        %v2200 = vadd.f32 %v2121, %v2146
        %v2201 = vadd.f32 %v1502, %v2151
        %v2202 = vadd.f32 %v1504, %v2151
        %v2203 = vadd.f32 %v1591, %v2151
        %v2204 = vadd.f32 %v1593, %v2151
        %v2205 = vadd.f32 %v1680, %v2151
        %v2206 = vadd.f32 %v1682, %v2151
        %v2207 = vadd.f32 %v1769, %v2151
        %v2208 = vadd.f32 %v1771, %v2151
        %v2209 = vadd.f32 %v1858, %v2151
        %v2210 = vadd.f32 %v1860, %v2151
        %v2211 = vadd.f32 %v1947, %v2151
        %v2212 = vadd.f32 %v1949, %v2151
        %v2213 = vadd.f32 %v2036, %v2151
        %v2214 = vadd.f32 %v2038, %v2151
        %v2215 = vadd.f32 %v2125, %v2151
        %v2216 = vadd.f32 %v2127, %v2151
        %v2217 = vmax.f32 %v2153, 0.0
        %v2218 = vmax.f32 %v2154, 0.0
        %v2219 = vmax.f32 %v2155, 0.0
        %v2220 = vmax.f32 %v2156, 0.0
        %v2221 = vmax.f32 %v2157, 0.0
        %v2222 = vmax.f32 %v2158, 0.0
        %v2223 = vmax.f32 %v2159, 0.0
        %v2224 = vmax.f32 %v2160, 0.0
        %v2225 = vmax.f32 %v2161, 0.0
        %v2226 = vmax.f32 %v2162, 0.0
        %v2227 = vmax.f32 %v2163, 0.0
        %v2228 = vmax.f32 %v2164, 0.0
        %v2229 = vmax.f32 %v2165, 0.0
        %v2230 = vmax.f32 %v2166, 0.0
        %v2231 = vmax.f32 %v2167, 0.0
        %v2232 = vmax.f32 %v2168, 0.0
        %v2233 = vmax.f32 %v2169, 0.0
        %v2234 = vmax.f32 %v2170, 0.0
        %v2235 = vmax.f32 %v2171, 0.0
        %v2236 = vmax.f32 %v2172, 0.0
        %v2237 = vmax.f32 %v2173, 0.0
        %v2238 = vmax.f32 %v2174, 0.0
        %v2239 = vmax.f32 %v2175, 0.0
        %v2240 = vmax.f32 %v2176, 0.0
        %v2241 = vmax.f32 %v2177, 0.0
        %v2242 = vmax.f32 %v2178, 0.0
        %v2243 = vmax.f32 %v2179, 0.0
        %v2244 = vmax.f32 %v2180, 0.0
        %v2245 = vmax.f32 %v2181, 0.0
        %v2246 = vmax.f32 %v2182, 0.0
        %v2247 = vmax.f32 %v2183, 0.0
        %v2248 = vmax.f32 %v2184, 0.0
        %v2249 = vmax.f32 %v2185, 0.0
        %v2250 = vmax.f32 %v2186, 0.0
        %v2251 = vmax.f32 %v2187, 0.0
        %v2252 = vmax.f32 %v2188, 0.0
        %v2253 = vmax.f32 %v2189, 0.0
        %v2254 = vmax.f32 %v2190, 0.0
        %v2255 = vmax.f32 %v2191, 0.0
        %v2256 = vmax.f32 %v2192, 0.0
        %v2257 = vmax.f32 %v2193, 0.0
        %v2258 = vmax.f32 %v2194, 0.0
        %v2259 = vmax.f32 %v2195, 0.0
        %v2260 = vmax.f32 %v2196, 0.0
        %v2261 = vmax.f32 %v2197, 0.0
        %v2262 = vmax.f32 %v2198, 0.0
        %v2263 = vmax.f32 %v2199, 0.0
        %v2264 = vmax.f32 %v2200, 0.0
        %v2265 = vmax.f32 %v2201, 0.0
        %v2266 = vmax.f32 %v2202, 0.0
        %v2267 = vmax.f32 %v2203, 0.0
        %v2268 = vmax.f32 %v2204, 0.0
        %v2269 = vmax.f32 %v2205, 0.0
        %v2270 = vmax.f32 %v2206, 0.0
        %v2271 = vmax.f32 %v2207, 0.0
        %v2272 = vmax.f32 %v2208, 0.0
        %v2273 = vmax.f32 %v2209, 0.0
        %v2274 = vmax.f32 %v2210, 0.0
        %v2275 = vmax.f32 %v2211, 0.0
        %v2276 = vmax.f32 %v2212, 0.0
        %v2277 = vmax.f32 %v2213, 0.0
        %v2278 = vmax.f32 %v2214, 0.0
        %v2279 = vmax.f32 %v2215, 0.0
        %v2280 = vmax.f32 %v2216, 0.0
        %v2281 = vld [vmem:[%s8] sm:$0xf]
        %v2282 = vld [vmem:[%s9] sm:$0xf]
        %2284 = vset.pattern.permute.xlu0 0
        %2285 = vperm.xlu0 %2284, %v2282
        %v2286 = vpop.permute.xlu0 %2285
        %vm2288 = vcmask 261120
        %v2290 = vsel %vm2288, %v2281, 0
        %2292 = vmatprep.subr.mxu0 0.0
        %2293 = vmatpush1.msra.mxu0 0.0
        %2294 = vmatprep.subr.mxu0 0.0
        %2295 = vmatpush1.msra.mxu0 0.0
        %2296 = vmatprep.subr.mxu0 0.0
        %2297 = vmatpush1.msra.mxu0 0.0
        %2298 = vmatprep.subr.mxu0 0.0
        %2299 = vmatpush1.msra.mxu0 0.0
        %2300 = vmatprep.subr.mxu0 0.0
        %2301 = vmatpush1.msra.mxu0 0.0
        %2302 = vmatprep.subr.mxu0 0.0
        %2303 = vmatpush1.msra.mxu0 0.0
        %2304 = vmatprep.subr.mxu0 0.0
        %2305 = vmatpush1.msra.mxu0 0.0
        %2306 = vmatprep.subr.mxu0 0.0
        %2307 = vmatpush1.msra.mxu0 0.0
        %2308 = vmatprep.subr.mxu0 0.0
        %2309 = vmatpush1.msra.mxu0 0.0
        %2310 = vmatprep.subr.mxu0 0.0
        %2311 = vmatpush1.msra.mxu0 0.0
        %2312 = vmatprep.subr.mxu0 0.0
        %2313 = vmatpush1.msra.mxu0 0.0
        %2314 = vmatprep.subr.mxu0 0.0
        %2315 = vmatpush1.msra.mxu0 0.0
        %2316 = vmatprep.subr.mxu0 %v2266
        %2317 = vmatpush1.msra.mxu0 %v2265
        %2318 = vmatprep.subr.mxu0 %v2250
        %2319 = vmatpush1.msra.mxu0 %v2249
        %2320 = vmatprep.subr.mxu0 %v2234
        %2321 = vmatpush1.msra.mxu0 %v2233
        %2322 = vmatprep.subr.mxu0 %v2218
        %2323 = vmatpush1.msra.mxu0 %v2217
        %2324 = vmatprep.subr.mxu0 0.0
        %2325 = vmatpush2.msra.mxu0 0.0
        %2326 = vmatprep.subr.mxu0 0.0
        %2327 = vmatpush2.msra.mxu0 0.0
        %2328 = vmatprep.subr.mxu0 0.0
        %2329 = vmatpush2.msra.mxu0 0.0
        %2330 = vmatprep.subr.mxu0 0.0
        %2331 = vmatpush2.msra.mxu0 0.0
        %2332 = vmatprep.subr.mxu0 0.0
        %2333 = vmatpush2.msra.mxu0 0.0
        %2334 = vmatprep.subr.mxu0 0.0
        %2335 = vmatpush2.msra.mxu0 0.0
        %2336 = vmatprep.subr.mxu0 0.0
        %2337 = vmatpush2.msra.mxu0 0.0
        %2338 = vmatprep.subr.mxu0 0.0
        %2339 = vmatpush2.msra.mxu0 0.0
        %2340 = vmatprep.subr.mxu0 0.0
        %2341 = vmatpush2.msra.mxu0 0.0
        %2342 = vmatprep.subr.mxu0 0.0
        %2343 = vmatpush2.msra.mxu0 0.0
        %2344 = vmatprep.subr.mxu0 0.0
        %2345 = vmatpush2.msra.mxu0 0.0
        %2346 = vmatprep.subr.mxu0 0.0
        %2347 = vmatpush2.msra.mxu0 0.0
        %2348 = vmatprep.subr.mxu0 0.0
        %2349 = vmatpush2.msra.mxu0 0.0
        %2350 = vmatprep.subr.mxu0 0.0
        %2351 = vmatpush2.msra.mxu0 0.0
        %2352 = vmatprep.subr.mxu0 0.0
        %2353 = vmatpush2.msra.mxu0 0.0
        %2354 = vmatprep.subr.mxu0 0.0
        %2355 = vmatpush2.msra.mxu0 0.0
        %2356 = vmatprep.mubr.f32.mxu0 0.0
        %2357 = vmatmul.mubr.f32.gmra.mxu0 %v2290
        %v2358 = vpop.f32.mrf.mxu0
        %v2359 = vadd.f32 %v2286, %v2358
        %v2360 = vpop.f32.mrf.mxu0
        %v2361 = vadd.f32 %v2286, %v2360
        %2362 = vdwg.mxu0
        %2363 = vmatprep.subr.mxu0 0.0
        %2364 = vmatpush1.msra.mxu0 0.0
        %2365 = vmatprep.subr.mxu0 0.0
        %2366 = vmatpush1.msra.mxu0 0.0
        %2367 = vmatprep.subr.mxu0 0.0
        %2368 = vmatpush1.msra.mxu0 0.0
        %2369 = vmatprep.subr.mxu0 0.0
        %2370 = vmatpush1.msra.mxu0 0.0
        %2371 = vmatprep.subr.mxu0 0.0
        %2372 = vmatpush1.msra.mxu0 0.0
        %2373 = vmatprep.subr.mxu0 0.0
        %2374 = vmatpush1.msra.mxu0 0.0
        %2375 = vmatprep.subr.mxu0 0.0
        %2376 = vmatpush1.msra.mxu0 0.0
        %2377 = vmatprep.subr.mxu0 0.0
        %2378 = vmatpush1.msra.mxu0 0.0
        %2379 = vmatprep.subr.mxu0 0.0
        %2380 = vmatpush1.msra.mxu0 0.0
        %2381 = vmatprep.subr.mxu0 0.0
        %2382 = vmatpush1.msra.mxu0 0.0
        %2383 = vmatprep.subr.mxu0 0.0
        %2384 = vmatpush1.msra.mxu0 0.0
        %2385 = vmatprep.subr.mxu0 0.0
        %2386 = vmatpush1.msra.mxu0 0.0
        %2387 = vmatprep.subr.mxu0 %v2268
        %2388 = vmatpush1.msra.mxu0 %v2267
        %2389 = vmatprep.subr.mxu0 %v2252
        %2390 = vmatpush1.msra.mxu0 %v2251
        %2391 = vmatprep.subr.mxu0 %v2236
        %2392 = vmatpush1.msra.mxu0 %v2235
        %2393 = vmatprep.subr.mxu0 %v2220
        %2394 = vmatpush1.msra.mxu0 %v2219
        %2395 = vmatprep.subr.mxu0 0.0
        %2396 = vmatpush2.msra.mxu0 0.0
        %2397 = vmatprep.subr.mxu0 0.0
        %2398 = vmatpush2.msra.mxu0 0.0
        %2399 = vmatprep.subr.mxu0 0.0
        %2400 = vmatpush2.msra.mxu0 0.0
        %2401 = vmatprep.subr.mxu0 0.0
        %2402 = vmatpush2.msra.mxu0 0.0
        %2403 = vmatprep.subr.mxu0 0.0
        %2404 = vmatpush2.msra.mxu0 0.0
        %2405 = vmatprep.subr.mxu0 0.0
        %2406 = vmatpush2.msra.mxu0 0.0
        %2407 = vmatprep.subr.mxu0 0.0
        %2408 = vmatpush2.msra.mxu0 0.0
        %2409 = vmatprep.subr.mxu0 0.0
        %2410 = vmatpush2.msra.mxu0 0.0
        %2411 = vmatprep.subr.mxu0 0.0
        %2412 = vmatpush2.msra.mxu0 0.0
        %2413 = vmatprep.subr.mxu0 0.0
        %2414 = vmatpush2.msra.mxu0 0.0
        %2415 = vmatprep.subr.mxu0 0.0
        %2416 = vmatpush2.msra.mxu0 0.0
        %2417 = vmatprep.subr.mxu0 0.0
        %2418 = vmatpush2.msra.mxu0 0.0
        %2419 = vmatprep.subr.mxu0 0.0
        %2420 = vmatpush2.msra.mxu0 0.0
        %2421 = vmatprep.subr.mxu0 0.0
        %2422 = vmatpush2.msra.mxu0 0.0
        %2423 = vmatprep.subr.mxu0 0.0
        %2424 = vmatpush2.msra.mxu0 0.0
        %2425 = vmatprep.subr.mxu0 0.0
        %2426 = vmatpush2.msra.mxu0 0.0
        %2427 = vmatprep.mubr.f32.mxu0 0.0
        %2428 = vmatmul.mubr.f32.gmra.mxu0 %v2290
        %v2429 = vpop.f32.mrf.mxu0
        %v2430 = vadd.f32 %v2286, %v2429
        %v2431 = vpop.f32.mrf.mxu0
        %v2432 = vadd.f32 %v2286, %v2431
        %2433 = vdwg.mxu0
        %2434 = vmatprep.subr.mxu0 0.0
        %2435 = vmatpush1.msra.mxu0 0.0
        %2436 = vmatprep.subr.mxu0 0.0
        %2437 = vmatpush1.msra.mxu0 0.0
        %2438 = vmatprep.subr.mxu0 0.0
        %2439 = vmatpush1.msra.mxu0 0.0
        %2440 = vmatprep.subr.mxu0 0.0
        %2441 = vmatpush1.msra.mxu0 0.0
        %2442 = vmatprep.subr.mxu0 0.0
        %2443 = vmatpush1.msra.mxu0 0.0
        %2444 = vmatprep.subr.mxu0 0.0
        %2445 = vmatpush1.msra.mxu0 0.0
        %2446 = vmatprep.subr.mxu0 0.0
        %2447 = vmatpush1.msra.mxu0 0.0
        %2448 = vmatprep.subr.mxu0 0.0
        %2449 = vmatpush1.msra.mxu0 0.0
        %2450 = vmatprep.subr.mxu0 0.0
        %2451 = vmatpush1.msra.mxu0 0.0
        %2452 = vmatprep.subr.mxu0 0.0
        %2453 = vmatpush1.msra.mxu0 0.0
        %2454 = vmatprep.subr.mxu0 0.0
        %2455 = vmatpush1.msra.mxu0 0.0
        %2456 = vmatprep.subr.mxu0 0.0
        %2457 = vmatpush1.msra.mxu0 0.0
        %2458 = vmatprep.subr.mxu0 %v2270
        %2459 = vmatpush1.msra.mxu0 %v2269
        %2460 = vmatprep.subr.mxu0 %v2254
        %2461 = vmatpush1.msra.mxu0 %v2253
        %2462 = vmatprep.subr.mxu0 %v2238
        %2463 = vmatpush1.msra.mxu0 %v2237
        %2464 = vmatprep.subr.mxu0 %v2222
        %2465 = vmatpush1.msra.mxu0 %v2221
        %2466 = vmatprep.subr.mxu0 0.0
        %2467 = vmatpush2.msra.mxu0 0.0
        %2468 = vmatprep.subr.mxu0 0.0
        %2469 = vmatpush2.msra.mxu0 0.0
        %2470 = vmatprep.subr.mxu0 0.0
        %2471 = vmatpush2.msra.mxu0 0.0
        %2472 = vmatprep.subr.mxu0 0.0
        %2473 = vmatpush2.msra.mxu0 0.0
        %2474 = vmatprep.subr.mxu0 0.0
        %2475 = vmatpush2.msra.mxu0 0.0
        %2476 = vmatprep.subr.mxu0 0.0
        %2477 = vmatpush2.msra.mxu0 0.0
        %2478 = vmatprep.subr.mxu0 0.0
        %2479 = vmatpush2.msra.mxu0 0.0
        %2480 = vmatprep.subr.mxu0 0.0
        %2481 = vmatpush2.msra.mxu0 0.0
        %2482 = vmatprep.subr.mxu0 0.0
        %2483 = vmatpush2.msra.mxu0 0.0
        %2484 = vmatprep.subr.mxu0 0.0
        %2485 = vmatpush2.msra.mxu0 0.0
        %2486 = vmatprep.subr.mxu0 0.0
        %2487 = vmatpush2.msra.mxu0 0.0
        %2488 = vmatprep.subr.mxu0 0.0
        %2489 = vmatpush2.msra.mxu0 0.0
        %2490 = vmatprep.subr.mxu0 0.0
        %2491 = vmatpush2.msra.mxu0 0.0
        %2492 = vmatprep.subr.mxu0 0.0
        %2493 = vmatpush2.msra.mxu0 0.0
        %2494 = vmatprep.subr.mxu0 0.0
        %2495 = vmatpush2.msra.mxu0 0.0
        %2496 = vmatprep.subr.mxu0 0.0
        %2497 = vmatpush2.msra.mxu0 0.0
        %2498 = vmatprep.mubr.f32.mxu0 0.0
        %2499 = vmatmul.mubr.f32.gmra.mxu0 %v2290
        %v2500 = vpop.f32.mrf.mxu0
        %v2501 = vadd.f32 %v2286, %v2500
        %v2502 = vpop.f32.mrf.mxu0
        %v2503 = vadd.f32 %v2286, %v2502
        %2504 = vdwg.mxu0
        %2505 = vmatprep.subr.mxu0 0.0
        %2506 = vmatpush1.msra.mxu0 0.0
        %2507 = vmatprep.subr.mxu0 0.0
        %2508 = vmatpush1.msra.mxu0 0.0
        %2509 = vmatprep.subr.mxu0 0.0
        %2510 = vmatpush1.msra.mxu0 0.0
        %2511 = vmatprep.subr.mxu0 0.0
        %2512 = vmatpush1.msra.mxu0 0.0
        %2513 = vmatprep.subr.mxu0 0.0
        %2514 = vmatpush1.msra.mxu0 0.0
        %2515 = vmatprep.subr.mxu0 0.0
        %2516 = vmatpush1.msra.mxu0 0.0
        %2517 = vmatprep.subr.mxu0 0.0
        %2518 = vmatpush1.msra.mxu0 0.0
        %2519 = vmatprep.subr.mxu0 0.0
        %2520 = vmatpush1.msra.mxu0 0.0
        %2521 = vmatprep.subr.mxu0 0.0
        %2522 = vmatpush1.msra.mxu0 0.0
        %2523 = vmatprep.subr.mxu0 0.0
        %2524 = vmatpush1.msra.mxu0 0.0
        %2525 = vmatprep.subr.mxu0 0.0
        %2526 = vmatpush1.msra.mxu0 0.0
        %2527 = vmatprep.subr.mxu0 0.0
        %2528 = vmatpush1.msra.mxu0 0.0
        %2529 = vmatprep.subr.mxu0 %v2272
        %2530 = vmatpush1.msra.mxu0 %v2271
        %2531 = vmatprep.subr.mxu0 %v2256
        %2532 = vmatpush1.msra.mxu0 %v2255
        %2533 = vmatprep.subr.mxu0 %v2240
        %2534 = vmatpush1.msra.mxu0 %v2239
        %2535 = vmatprep.subr.mxu0 %v2224
        %2536 = vmatpush1.msra.mxu0 %v2223
        %2537 = vmatprep.subr.mxu0 0.0
        %2538 = vmatpush2.msra.mxu0 0.0
        %2539 = vmatprep.subr.mxu0 0.0
        %2540 = vmatpush2.msra.mxu0 0.0
        %2541 = vmatprep.subr.mxu0 0.0
        %2542 = vmatpush2.msra.mxu0 0.0
        %2543 = vmatprep.subr.mxu0 0.0
        %2544 = vmatpush2.msra.mxu0 0.0
        %2545 = vmatprep.subr.mxu0 0.0
        %2546 = vmatpush2.msra.mxu0 0.0
        %2547 = vmatprep.subr.mxu0 0.0
        %2548 = vmatpush2.msra.mxu0 0.0
        %2549 = vmatprep.subr.mxu0 0.0
        %2550 = vmatpush2.msra.mxu0 0.0
        %2551 = vmatprep.subr.mxu0 0.0
        %2552 = vmatpush2.msra.mxu0 0.0
        %2553 = vmatprep.subr.mxu0 0.0
        %2554 = vmatpush2.msra.mxu0 0.0
        %2555 = vmatprep.subr.mxu0 0.0
        %2556 = vmatpush2.msra.mxu0 0.0
        %2557 = vmatprep.subr.mxu0 0.0
        %2558 = vmatpush2.msra.mxu0 0.0
        %2559 = vmatprep.subr.mxu0 0.0
        %2560 = vmatpush2.msra.mxu0 0.0
        %2561 = vmatprep.subr.mxu0 0.0
        %2562 = vmatpush2.msra.mxu0 0.0
        %2563 = vmatprep.subr.mxu0 0.0
        %2564 = vmatpush2.msra.mxu0 0.0
        %2565 = vmatprep.subr.mxu0 0.0
        %2566 = vmatpush2.msra.mxu0 0.0
        %2567 = vmatprep.subr.mxu0 0.0
        %2568 = vmatpush2.msra.mxu0 0.0
        %2569 = vmatprep.mubr.f32.mxu0 0.0
        %2570 = vmatmul.mubr.f32.gmra.mxu0 %v2290
        %v2571 = vpop.f32.mrf.mxu0
        %v2572 = vadd.f32 %v2286, %v2571
        %v2573 = vpop.f32.mrf.mxu0
        %v2574 = vadd.f32 %v2286, %v2573
        %2575 = vdwg.mxu0
        %2576 = vmatprep.subr.mxu0 0.0
        %2577 = vmatpush1.msra.mxu0 0.0
        %2578 = vmatprep.subr.mxu0 0.0
        %2579 = vmatpush1.msra.mxu0 0.0
        %2580 = vmatprep.subr.mxu0 0.0
        %2581 = vmatpush1.msra.mxu0 0.0
        %2582 = vmatprep.subr.mxu0 0.0
        %2583 = vmatpush1.msra.mxu0 0.0
        %2584 = vmatprep.subr.mxu0 0.0
        %2585 = vmatpush1.msra.mxu0 0.0
        %2586 = vmatprep.subr.mxu0 0.0
        %2587 = vmatpush1.msra.mxu0 0.0
        %2588 = vmatprep.subr.mxu0 0.0
        %2589 = vmatpush1.msra.mxu0 0.0
        %2590 = vmatprep.subr.mxu0 0.0
        %2591 = vmatpush1.msra.mxu0 0.0
        %2592 = vmatprep.subr.mxu0 0.0
        %2593 = vmatpush1.msra.mxu0 0.0
        %2594 = vmatprep.subr.mxu0 0.0
        %2595 = vmatpush1.msra.mxu0 0.0
        %2596 = vmatprep.subr.mxu0 0.0
        %2597 = vmatpush1.msra.mxu0 0.0
        %2598 = vmatprep.subr.mxu0 0.0
        %2599 = vmatpush1.msra.mxu0 0.0
        %2600 = vmatprep.subr.mxu0 %v2274
        %2601 = vmatpush1.msra.mxu0 %v2273
        %2602 = vmatprep.subr.mxu0 %v2258
        %2603 = vmatpush1.msra.mxu0 %v2257
        %2604 = vmatprep.subr.mxu0 %v2242
        %2605 = vmatpush1.msra.mxu0 %v2241
        %2606 = vmatprep.subr.mxu0 %v2226
        %2607 = vmatpush1.msra.mxu0 %v2225
        %2608 = vmatprep.subr.mxu0 0.0
        %2609 = vmatpush2.msra.mxu0 0.0
        %2610 = vmatprep.subr.mxu0 0.0
        %2611 = vmatpush2.msra.mxu0 0.0
        %2612 = vmatprep.subr.mxu0 0.0
        %2613 = vmatpush2.msra.mxu0 0.0
        %2614 = vmatprep.subr.mxu0 0.0
        %2615 = vmatpush2.msra.mxu0 0.0
        %2616 = vmatprep.subr.mxu0 0.0
        %2617 = vmatpush2.msra.mxu0 0.0
        %2618 = vmatprep.subr.mxu0 0.0
        %2619 = vmatpush2.msra.mxu0 0.0
        %2620 = vmatprep.subr.mxu0 0.0
        %2621 = vmatpush2.msra.mxu0 0.0
        %2622 = vmatprep.subr.mxu0 0.0
        %2623 = vmatpush2.msra.mxu0 0.0
        %2624 = vmatprep.subr.mxu0 0.0
        %2625 = vmatpush2.msra.mxu0 0.0
        %2626 = vmatprep.subr.mxu0 0.0
        %2627 = vmatpush2.msra.mxu0 0.0
        %2628 = vmatprep.subr.mxu0 0.0
        %2629 = vmatpush2.msra.mxu0 0.0
        %2630 = vmatprep.subr.mxu0 0.0
        %2631 = vmatpush2.msra.mxu0 0.0
        %2632 = vmatprep.subr.mxu0 0.0
        %2633 = vmatpush2.msra.mxu0 0.0
        %2634 = vmatprep.subr.mxu0 0.0
        %2635 = vmatpush2.msra.mxu0 0.0
        %2636 = vmatprep.subr.mxu0 0.0
        %2637 = vmatpush2.msra.mxu0 0.0
        %2638 = vmatprep.subr.mxu0 0.0
        %2639 = vmatpush2.msra.mxu0 0.0
        %2640 = vmatprep.mubr.f32.mxu0 0.0
        %2641 = vmatmul.mubr.f32.gmra.mxu0 %v2290
        %v2642 = vpop.f32.mrf.mxu0
        %v2643 = vadd.f32 %v2286, %v2642
        %v2644 = vpop.f32.mrf.mxu0
        %v2645 = vadd.f32 %v2286, %v2644
        %2646 = vdwg.mxu0
        %2647 = vmatprep.subr.mxu0 0.0
        %2648 = vmatpush1.msra.mxu0 0.0
        %2649 = vmatprep.subr.mxu0 0.0
        %2650 = vmatpush1.msra.mxu0 0.0
        %2651 = vmatprep.subr.mxu0 0.0
        %2652 = vmatpush1.msra.mxu0 0.0
        %2653 = vmatprep.subr.mxu0 0.0
        %2654 = vmatpush1.msra.mxu0 0.0
        %2655 = vmatprep.subr.mxu0 0.0
        %2656 = vmatpush1.msra.mxu0 0.0
        %2657 = vmatprep.subr.mxu0 0.0
        %2658 = vmatpush1.msra.mxu0 0.0
        %2659 = vmatprep.subr.mxu0 0.0
        %2660 = vmatpush1.msra.mxu0 0.0
        %2661 = vmatprep.subr.mxu0 0.0
        %2662 = vmatpush1.msra.mxu0 0.0
        %2663 = vmatprep.subr.mxu0 0.0
        %2664 = vmatpush1.msra.mxu0 0.0
        %2665 = vmatprep.subr.mxu0 0.0
        %2666 = vmatpush1.msra.mxu0 0.0
        %2667 = vmatprep.subr.mxu0 0.0
        %2668 = vmatpush1.msra.mxu0 0.0
        %2669 = vmatprep.subr.mxu0 0.0
        %2670 = vmatpush1.msra.mxu0 0.0
        %2671 = vmatprep.subr.mxu0 %v2276
        %2672 = vmatpush1.msra.mxu0 %v2275
        %2673 = vmatprep.subr.mxu0 %v2260
        %2674 = vmatpush1.msra.mxu0 %v2259
        %2675 = vmatprep.subr.mxu0 %v2244
        %2676 = vmatpush1.msra.mxu0 %v2243
        %2677 = vmatprep.subr.mxu0 %v2228
        %2678 = vmatpush1.msra.mxu0 %v2227
        %2679 = vmatprep.subr.mxu0 0.0
        %2680 = vmatpush2.msra.mxu0 0.0
        %2681 = vmatprep.subr.mxu0 0.0
        %2682 = vmatpush2.msra.mxu0 0.0
        %2683 = vmatprep.subr.mxu0 0.0
        %2684 = vmatpush2.msra.mxu0 0.0
        %2685 = vmatprep.subr.mxu0 0.0
        %2686 = vmatpush2.msra.mxu0 0.0
        %2687 = vmatprep.subr.mxu0 0.0
        %2688 = vmatpush2.msra.mxu0 0.0
        %2689 = vmatprep.subr.mxu0 0.0
        %2690 = vmatpush2.msra.mxu0 0.0
        %2691 = vmatprep.subr.mxu0 0.0
        %2692 = vmatpush2.msra.mxu0 0.0
        %2693 = vmatprep.subr.mxu0 0.0
        %2694 = vmatpush2.msra.mxu0 0.0
        %2695 = vmatprep.subr.mxu0 0.0
        %2696 = vmatpush2.msra.mxu0 0.0
        %2697 = vmatprep.subr.mxu0 0.0
        %2698 = vmatpush2.msra.mxu0 0.0
        %2699 = vmatprep.subr.mxu0 0.0
        %2700 = vmatpush2.msra.mxu0 0.0
        %2701 = vmatprep.subr.mxu0 0.0
        %2702 = vmatpush2.msra.mxu0 0.0
        %2703 = vmatprep.subr.mxu0 0.0
        %2704 = vmatpush2.msra.mxu0 0.0
        %2705 = vmatprep.subr.mxu0 0.0
        %2706 = vmatpush2.msra.mxu0 0.0
        %2707 = vmatprep.subr.mxu0 0.0
        %2708 = vmatpush2.msra.mxu0 0.0
        %2709 = vmatprep.subr.mxu0 0.0
        %2710 = vmatpush2.msra.mxu0 0.0
        %2711 = vmatprep.mubr.f32.mxu0 0.0
        %2712 = vmatmul.mubr.f32.gmra.mxu0 %v2290
        %v2713 = vpop.f32.mrf.mxu0
        %v2714 = vadd.f32 %v2286, %v2713
        %v2715 = vpop.f32.mrf.mxu0
        %v2716 = vadd.f32 %v2286, %v2715
        %2717 = vdwg.mxu0
        %2718 = vmatprep.subr.mxu0 0.0
        %2719 = vmatpush1.msra.mxu0 0.0
        %2720 = vmatprep.subr.mxu0 0.0
        %2721 = vmatpush1.msra.mxu0 0.0
        %2722 = vmatprep.subr.mxu0 0.0
        %2723 = vmatpush1.msra.mxu0 0.0
        %2724 = vmatprep.subr.mxu0 0.0
        %2725 = vmatpush1.msra.mxu0 0.0
        %2726 = vmatprep.subr.mxu0 0.0
        %2727 = vmatpush1.msra.mxu0 0.0
        %2728 = vmatprep.subr.mxu0 0.0
        %2729 = vmatpush1.msra.mxu0 0.0
        %2730 = vmatprep.subr.mxu0 0.0
        %2731 = vmatpush1.msra.mxu0 0.0
        %2732 = vmatprep.subr.mxu0 0.0
        %2733 = vmatpush1.msra.mxu0 0.0
        %2734 = vmatprep.subr.mxu0 0.0
        %2735 = vmatpush1.msra.mxu0 0.0
        %2736 = vmatprep.subr.mxu0 0.0
        %2737 = vmatpush1.msra.mxu0 0.0
        %2738 = vmatprep.subr.mxu0 0.0
        %2739 = vmatpush1.msra.mxu0 0.0
        %2740 = vmatprep.subr.mxu0 0.0
        %2741 = vmatpush1.msra.mxu0 0.0
        %2742 = vmatprep.subr.mxu0 %v2278
        %2743 = vmatpush1.msra.mxu0 %v2277
        %2744 = vmatprep.subr.mxu0 %v2262
        %2745 = vmatpush1.msra.mxu0 %v2261
        %2746 = vmatprep.subr.mxu0 %v2246
        %2747 = vmatpush1.msra.mxu0 %v2245
        %2748 = vmatprep.subr.mxu0 %v2230
        %2749 = vmatpush1.msra.mxu0 %v2229
        %2750 = vmatprep.subr.mxu0 0.0
        %2751 = vmatpush2.msra.mxu0 0.0
        %2752 = vmatprep.subr.mxu0 0.0
        %2753 = vmatpush2.msra.mxu0 0.0
        %2754 = vmatprep.subr.mxu0 0.0
        %2755 = vmatpush2.msra.mxu0 0.0
        %2756 = vmatprep.subr.mxu0 0.0
        %2757 = vmatpush2.msra.mxu0 0.0
        %2758 = vmatprep.subr.mxu0 0.0
        %2759 = vmatpush2.msra.mxu0 0.0
        %2760 = vmatprep.subr.mxu0 0.0
        %2761 = vmatpush2.msra.mxu0 0.0
        %2762 = vmatprep.subr.mxu0 0.0
        %2763 = vmatpush2.msra.mxu0 0.0
        %2764 = vmatprep.subr.mxu0 0.0
        %2765 = vmatpush2.msra.mxu0 0.0
        %2766 = vmatprep.subr.mxu0 0.0
        %2767 = vmatpush2.msra.mxu0 0.0
        %2768 = vmatprep.subr.mxu0 0.0
        %2769 = vmatpush2.msra.mxu0 0.0
        %2770 = vmatprep.subr.mxu0 0.0
        %2771 = vmatpush2.msra.mxu0 0.0
        %2772 = vmatprep.subr.mxu0 0.0
        %2773 = vmatpush2.msra.mxu0 0.0
        %2774 = vmatprep.subr.mxu0 0.0
        %2775 = vmatpush2.msra.mxu0 0.0
        %2776 = vmatprep.subr.mxu0 0.0
        %2777 = vmatpush2.msra.mxu0 0.0
        %2778 = vmatprep.subr.mxu0 0.0
        %2779 = vmatpush2.msra.mxu0 0.0
        %2780 = vmatprep.subr.mxu0 0.0
        %2781 = vmatpush2.msra.mxu0 0.0
        %2782 = vmatprep.mubr.f32.mxu0 0.0
        %2783 = vmatmul.mubr.f32.gmra.mxu0 %v2290
        %v2784 = vpop.f32.mrf.mxu0
        %v2785 = vadd.f32 %v2286, %v2784
        %v2786 = vpop.f32.mrf.mxu0
        %v2787 = vadd.f32 %v2286, %v2786
        %2788 = vdwg.mxu0
        %2789 = vmatprep.subr.mxu0 0.0
        %2790 = vmatpush1.msra.mxu0 0.0
        %2791 = vmatprep.subr.mxu0 0.0
        %2792 = vmatpush1.msra.mxu0 0.0
        %2793 = vmatprep.subr.mxu0 0.0
        %2794 = vmatpush1.msra.mxu0 0.0
        %2795 = vmatprep.subr.mxu0 0.0
        %2796 = vmatpush1.msra.mxu0 0.0
        %2797 = vmatprep.subr.mxu0 0.0
        %2798 = vmatpush1.msra.mxu0 0.0
        %2799 = vmatprep.subr.mxu0 0.0
        %2800 = vmatpush1.msra.mxu0 0.0
        %2801 = vmatprep.subr.mxu0 0.0
        %2802 = vmatpush1.msra.mxu0 0.0
        %2803 = vmatprep.subr.mxu0 0.0
        %2804 = vmatpush1.msra.mxu0 0.0
        %2805 = vmatprep.subr.mxu0 0.0
        %2806 = vmatpush1.msra.mxu0 0.0
        %2807 = vmatprep.subr.mxu0 0.0
        %2808 = vmatpush1.msra.mxu0 0.0
        %2809 = vmatprep.subr.mxu0 0.0
        %2810 = vmatpush1.msra.mxu0 0.0
        %2811 = vmatprep.subr.mxu0 0.0
        %2812 = vmatpush1.msra.mxu0 0.0
        %2813 = vmatprep.subr.mxu0 %v2280
        %2814 = vmatpush1.msra.mxu0 %v2279
        %2815 = vmatprep.subr.mxu0 %v2264
        %2816 = vmatpush1.msra.mxu0 %v2263
        %2817 = vmatprep.subr.mxu0 %v2248
        %2818 = vmatpush1.msra.mxu0 %v2247
        %2819 = vmatprep.subr.mxu0 %v2232
        %2820 = vmatpush1.msra.mxu0 %v2231
        %2821 = vmatprep.subr.mxu0 0.0
        %2822 = vmatpush2.msra.mxu0 0.0
        %2823 = vmatprep.subr.mxu0 0.0
        %2824 = vmatpush2.msra.mxu0 0.0
        %2825 = vmatprep.subr.mxu0 0.0
        %2826 = vmatpush2.msra.mxu0 0.0
        %2827 = vmatprep.subr.mxu0 0.0
        %2828 = vmatpush2.msra.mxu0 0.0
        %2829 = vmatprep.subr.mxu0 0.0
        %2830 = vmatpush2.msra.mxu0 0.0
        %2831 = vmatprep.subr.mxu0 0.0
        %2832 = vmatpush2.msra.mxu0 0.0
        %2833 = vmatprep.subr.mxu0 0.0
        %2834 = vmatpush2.msra.mxu0 0.0
        %2835 = vmatprep.subr.mxu0 0.0
        %2836 = vmatpush2.msra.mxu0 0.0
        %2837 = vmatprep.subr.mxu0 0.0
        %2838 = vmatpush2.msra.mxu0 0.0
        %2839 = vmatprep.subr.mxu0 0.0
        %2840 = vmatpush2.msra.mxu0 0.0
        %2841 = vmatprep.subr.mxu0 0.0
        %2842 = vmatpush2.msra.mxu0 0.0
        %2843 = vmatprep.subr.mxu0 0.0
        %2844 = vmatpush2.msra.mxu0 0.0
        %2845 = vmatprep.subr.mxu0 0.0
        %2846 = vmatpush2.msra.mxu0 0.0
        %2847 = vmatprep.subr.mxu0 0.0
        %2848 = vmatpush2.msra.mxu0 0.0
        %2849 = vmatprep.subr.mxu0 0.0
        %2850 = vmatpush2.msra.mxu0 0.0
        %2851 = vmatprep.subr.mxu0 0.0
        %2852 = vmatpush2.msra.mxu0 0.0
        %2853 = vmatprep.mubr.f32.mxu0 0.0
        %2854 = vmatmul.mubr.f32.gmra.mxu0 %v2290
        %v2855 = vpop.f32.mrf.mxu0
        %v2856 = vadd.f32 %v2286, %v2855
        %v2857 = vpop.f32.mrf.mxu0
        %v2858 = vadd.f32 %v2286, %v2857
        %2859 = vdwg.mxu0
        %v2876 = vcombine.low %v2359, %v2361
        %v2877 = vcombine.low %v2430, %v2432
        %v2878 = vcombine.low %v2501, %v2503
        %v2879 = vcombine.low %v2572, %v2574
        %v2880 = vcombine.low %v2643, %v2645
        %v2881 = vcombine.low %v2714, %v2716
        %v2882 = vcombine.low %v2785, %v2787
        %v2883 = vcombine.low %v2856, %v2858
        %v2892 = vsub.f32 %v541, %v2876
        %v2893 = vsub.f32 %v542, %v2877
        %v2894 = vsub.f32 %v543, %v2878
        %v2895 = vsub.f32 %v544, %v2879
        %v2896 = vsub.f32 %v545, %v2880
        %v2897 = vsub.f32 %v546, %v2881
        %v2898 = vsub.f32 %v547, %v2882
        %v2899 = vsub.f32 %v548, %v2883
        %v2900 = vmul.f32 %v2892, %v2892
        %v2901 = vmul.f32 %v2893, %v2893
        %v2902 = vmul.f32 %v2894, %v2894
        %v2903 = vmul.f32 %v2895, %v2895
        %v2904 = vmul.f32 %v2896, %v2896
        %v2905 = vmul.f32 %v2897, %v2897
        %v2906 = vmul.f32 %v2898, %v2898
        %v2907 = vmul.f32 %v2899, %v2899
        %v2909 = vrot.slane %v2900, 4
        %v2911 = vadd.f32 %v2900, %v2909
        %v2912 = vadd.f32 %v2911, %v2901
        %v2914 = vrot.slane %v2901, 4
        %v2916 = vadd.f32 %v2912, %v2914
        %v2917 = vadd.f32 %v2916, %v2902
        %v2919 = vrot.slane %v2902, 4
        %v2921 = vadd.f32 %v2917, %v2919
        %v2922 = vadd.f32 %v2921, %v2903
        %v2924 = vrot.slane %v2903, 4
        %v2926 = vadd.f32 %v2922, %v2924
        %v2927 = vadd.f32 %v2926, %v2904
        %v2929 = vrot.slane %v2904, 4
        %v2931 = vadd.f32 %v2927, %v2929
        %v2932 = vadd.f32 %v2931, %v2905
        %v2934 = vrot.slane %v2905, 4
        %v2936 = vadd.f32 %v2932, %v2934
        %v2937 = vadd.f32 %v2936, %v2906
        %v2939 = vrot.slane %v2906, 4
        %v2941 = vadd.f32 %v2937, %v2939
        %v2942 = vadd.f32 %v2941, %v2907
        %v2944 = vrot.slane %v2907, 4
        %v2946 = vadd.f32 %v2942, %v2944
        %v2947 = vsel %vm612, %v2946, 0.0
        %v2948 = vrot.slane %v2947, 4
        %v2949 = vadd.f32 %v2947, %v2948
        %v2950 = vrot.slane %v2949, 2
        %v2951 = vadd.f32 %v2949, %v2950
        %v2952 = vrot.slane %v2951, 1
        %v2953 = vadd.f32 %v2951, %v2952
        %v2954 = vld [vmem:[%s500] sm:$0x1]
        %v2955 = vadd.f32 %v2954, %v2953
        %2956 = vst [vmem:[%s500] sm:$0x1] %v2955
        %s2957 = sand.u32 %s288, 1
        %s2958 = scalar_lea.sflag [#allocation4], %s2957
        %s2959 = sand.u32 %s288, 1
        %s2960 = scalar_lea.vmem [#allocation11], %s2959
        // Predicated region
        $region81: #{tpu_custom_call.1} parent=59 // pred_check
          %p2961 = pneg %p298
        $region82: #{tpu_custom_call.1} parent=59 // pred_check_branch
          %2963 = sbr.rel (%p2961) target = $region84
        $region83: #{tpu_custom_call.1} parent=59 // pred_region
          %s2965 = ssub.s32 16, 16
          %2966 = vsyncadd %s2958, %s2965
          %s2967 = smul.addr %s36, 16
          %s2968 = scalar_lea.hbm %s10, %s2967
          %s2970 = sshll.u32 %s2960, 4
          %s2971 = int_to_ptr.vmem [resolvable:$true] %s2970
          %2973 = dma.vmem_to_hbm [thread:$0]  %s2971, 16, %s2968, %s2958
        $region84: #{tpu_custom_call.1} parent=59 // pred_fallthru
          _
      $region60: #{tpu_custom_call.1} parent=5 // pred_fallthru
        _
      %p2974 = scmp.le.s32.totalorder 2, %s27
      // Predicated region
      $region85: #{tpu_custom_call.1} parent=5 // pred_check
        %p2975 = pneg %p2974
      $region86: #{tpu_custom_call.1} parent=5 // pred_check_branch
        %2977 = sbr.rel (%p2975) target = $region88
      $region87: #{tpu_custom_call.1} parent=5 // pred_region
        %s2978 = ssub.s32 %s27, 2
        // Predicated region
        $region89: #{tpu_custom_call.1} parent=87 // pred_check
          %p2979 = pneg %p304
        $region90: #{tpu_custom_call.1} parent=87 // pred_check_branch
          %2981 = sbr.rel (%p2979) target = $region92
        $region91: #{tpu_custom_call.1} parent=87 // pred_region
          %s2982 = sand.u32 %s289, 1
          %s2983 = scalar_lea.sflag [#allocation4], %s2982
          %s2984 = sand.u32 %s289, 1
          %s2985 = scalar_lea.vmem [#allocation11], %s2984
          %2986 = dma.done %s2983, 16
        $region92: #{tpu_custom_call.1} parent=87 // pred_fallthru
          _
      $region88: #{tpu_custom_call.1} parent=5 // pred_fallthru
        _
    $region6: #{tpu_custom_call.1} parent=1 // loop_footer
      %s31 = sadd.s32 1, %s27
    $region7: #{tpu_custom_call.1} parent=1 // loop_footer_branch
      %26 = sbr.rel target = $region3
    $region8: #{tpu_custom_call.1} parent=1 // loop_exit
      _
    %2987 = vsyncpa [#allocation3], 1
    %s2988 = scalar_lea.sflag [#allocation3], 1
    %2989 = vsyncpa %s2988, 1
    %2990 = vsyncpa [#allocation10], 1
    %s2991 = scalar_lea.sflag [#allocation10], 1
    %2992 = vsyncpa %s2991, 1
    %2993 = vsyncpa [#allocation4], 1
    %s2994 = scalar_lea.sflag [#allocation4], 1
    %2995 = vsyncpa %s2994, 1
    %2996 = vsyncpa [#allocation5], 1
    %s2997 = scalar_lea.sflag [#allocation5], 1
    %2998 = vsyncpa %s2997, 1
    %2999 = vsyncpa [#allocation7], 1

</llo_original>
